<compile_context>
chip_gen: v7x
topology: tpu7x:2x2x1
jax: 0.10.0
libtpu: 0.0.40
codegen_flags: <defaults>
</compile_context>

<pallas_src>
import functools
import math

import jax
import jax.numpy as jnp
from jax.experimental import pallas as pl
from jax.experimental.pallas import tpu as pltpu


# ----------------------------- fused Pallas kernel -----------------------------

def _mha_kernel(x_ref, y_ref, wq_ref, bq_ref, wkv_ref, bkv_ref, wp_ref, bp_ref,
                out_ref, attw_ref, *, bb, N, M, num_heads, mm_dtype):
    """One batch-block (bb batch elements) per grid step; everything stays in VMEM."""
    A = wq_ref.shape[1]
    H = num_heads
    Dh = A // H

    xf = x_ref[...]                                   # (bb*N, D)
    yf = y_ref[...]                                   # (bb*M, D)

    # Q projection (d_model^-0.5 already folded into Wq/bq at param-prep time) and the
    # fused K/V projection — two MXU passes over all bb*N / bb*M rows at once.
    q = jnp.dot(xf.astype(mm_dtype), wq_ref[...].astype(mm_dtype),
                preferred_element_type=jnp.float32) + bq_ref[...]            # (bb*N, A) f32
    kv = jnp.dot(yf.astype(mm_dtype), wkv_ref[...].astype(mm_dtype),
                 preferred_element_type=jnp.float32) + bkv_ref[...]          # (bb*M, 2A) f32
    k = kv[:, :A]                                     # lane-aligned split at A
    v = kv[:, A:]

    ao_slabs = []                                     # per-batch (N, A) lane-dense slabs
    attw_slabs = []                                   # per-batch (N, H*M) lane-dense slabs
    for b in range(bb):                               # small unroll; heads are batched below
        qb = q[b * N:(b + 1) * N, :]                  # (N, A)
        kb = k[b * M:(b + 1) * M, :]                  # (M, A)
        vb = v[b * M:(b + 1) * M, :]                  # (M, A)

        # Head-split relayout (rows, H*Dh) -> (H, rows, Dh); one-time stack of lane slices.
        qh = jnp.stack([qb[:, h * Dh:(h + 1) * Dh] for h in range(H)], axis=0).astype(mm_dtype)
        kh = jnp.stack([kb[:, h * Dh:(h + 1) * Dh] for h in range(H)], axis=0).astype(mm_dtype)
        vh = jnp.stack([vb[:, h * Dh:(h + 1) * Dh] for h in range(H)], axis=0).astype(mm_dtype)

        # Scores for all heads in one batched MXU sequence (contracts Dh, no k transpose).
        s = jnp.einsum('hnd,hmd->hnm', qh, kh,
                       preferred_element_type=jnp.float32)                   # (H, N, M) f32
        m_ = jnp.max(s, axis=-1, keepdims=True)
        e = jnp.exp(s - m_)
        inv = pl.reciprocal(jnp.sum(e, axis=-1, keepdims=True), approx=True)
        w = e * inv                                                          # (H, N, M) f32

        # P @ V for all heads in one batched MXU sequence.
        o = jnp.einsum('hnm,hmd->hnd', w.astype(mm_dtype), vh,
                       preferred_element_type=jnp.float32)                   # (H, N, Dh) f32

        # Lane-dense slabs (head-major along lanes) — matches torch permute(0,2,1,3).view.
        ao_slabs.append(jnp.concatenate([o[h] for h in range(H)], axis=-1))      # (N, A)
        attw_slabs.append(jnp.concatenate([w[h] for h in range(H)], axis=-1))    # (N, H*M)

    # Output (feature) projection on all rows of the batch block at once.
    ao = jnp.concatenate(ao_slabs, axis=0)                                   # (bb*N, A)
    out = jnp.dot(ao.astype(mm_dtype), wp_ref[...].astype(mm_dtype),
                  preferred_element_type=jnp.float32) + bp_ref[...]          # (bb*N, D)
    out_ref[...] = out.astype(out_ref.dtype)

    # Single unmasked, lane-dense store of the attention weights.
    attw_ref[...] = jnp.concatenate(attw_slabs, axis=0).astype(attw_ref.dtype)


def prepare_params(params, d_model):
    """One-time weight prep (outside the jitted forward, per performance review):
       fold the d_model^-0.5 scale into Wq/bq and fuse Wk|Wv / bk|bv."""
    wq, bq = params["q"]
    wk, bk = params["k"]
    wv, bv = params["v"]
    wp, bp = params["proj"]
    A = wq.shape[1]
    D = wq.shape[0]
    scale = float(d_model) ** (-0.5)                  # reference scales q@k^T by d_model^-0.5
    return {
        "wq": wq * scale,
        "bq": (bq * scale).reshape(1, A),
        "wkv": jnp.concatenate([wk, wv], axis=1),     # (D, 2A)
        "bkv": jnp.concatenate([bk, bv], axis=0).reshape(1, 2 * A),
        "wp": wp,
        "bp": bp.reshape(1, D),
    }


def multi_attention_network(x, y, prepared, *, num_heads,
                            mm_dtype=jnp.bfloat16, batch_block=None):
    """Fused MultiAttentionNetwork.forward (mask=None, dropout=eval)."""
    # TODO(synk): optional attention mask (masked_fill) branch not implemented;
    # forward runs with mask=None as in the exercised reference path.
    B, N, D = x.shape
    _, M, _ = y.shape
    A = prepared["wq"].shape[1]
    H = num_heads
    assert A % H == 0
    bb = B if batch_block is None else batch_block    # batch elements per grid step
    assert B % bb == 0
    # NOTE: weights are stored as (in, out); importing PyTorch nn.Linear.weight
    # requires a transpose.

    xf = x.reshape(B * N, D)                          # free HBM-level reshapes
    yf = y.reshape(B * M, D)

    kernel = functools.partial(_mha_kernel, bb=bb, N=N, M=M,
                               num_heads=H, mm_dtype=mm_dtype)
    # Per-step VMEM (weights + a batch block of activations) is well under 1 MB here;
    # when scaling N/M, tile N with an extra "parallel" grid axis (also feeds v7x's 2nd
    # TensorCore) and bound the (rows, H*M) attw block before it eats v7x's 64 MiB VMEM.
    out_flat, attw_flat = pl.pallas_call(
        kernel,
        out_shape=(jax.ShapeDtypeStruct((B * N, D), x.dtype),
                   jax.ShapeDtypeStruct((B * N, H * M), jnp.float32)),
        grid=(B // bb,),
        in_specs=[
            pl.BlockSpec((bb * N, D), lambda i: (i, 0)),       # x rows for this step
            pl.BlockSpec((bb * M, D), lambda i: (i, 0)),       # y rows for this step
            pl.BlockSpec((D, A), lambda i: (0, 0)),            # Wq  (resident, pre-scaled)
            pl.BlockSpec((1, A), lambda i: (0, 0)),            # bq  (pre-scaled)
            pl.BlockSpec((D, 2 * A), lambda i: (0, 0)),        # Wkv (resident)
            pl.BlockSpec((1, 2 * A), lambda i: (0, 0)),        # bkv
            pl.BlockSpec((A, D), lambda i: (0, 0)),            # Wproj (resident)
            pl.BlockSpec((1, D), lambda i: (0, 0)),            # bproj
        ],
        out_specs=(
            pl.BlockSpec((bb * N, D), lambda i: (i, 0)),
            pl.BlockSpec((bb * N, H * M), lambda i: (i, 0)),   # lane-dense attw slab
        ),
        compiler_params=pltpu.CompilerParams(
            dimension_semantics=("parallel",)),
    )(xf, yf, prepared["wq"], prepared["bq"], prepared["wkv"], prepared["bkv"],
      prepared["wp"], prepared["bp"])

    out = out_flat.reshape(B, N, D)
    attw = attw_flat.reshape(B, N, H, M).transpose(0, 2, 1, 3)   # back to (B, H, N, M)
    return out, attw


# ----------------------------- parameters & reference -----------------------------

def _init_linear(key, fan_in, fan_out):
    # PyTorch nn.Linear default init: U(-1/sqrt(fan_in), 1/sqrt(fan_in)).
    kw, kb = jax.random.split(key)
    bound = 1.0 / math.sqrt(fan_in)
    w = jax.random.uniform(kw, (fan_in, fan_out), jnp.float32, -bound, bound)
    b = jax.random.uniform(kb, (fan_out,), jnp.float32, -bound, bound)
    return w, b


def init_multi_attention_params(key, d_model, attention_dim):
    kq, kk, kv, kp = jax.random.split(key, 4)
    return {
        "q": _init_linear(kq, d_model, attention_dim),
        "k": _init_linear(kk, d_model, attention_dim),
        "v": _init_linear(kv, d_model, attention_dim),
        "proj": _init_linear(kp, attention_dim, d_model),
    }


def reference_forward(x, y, params, num_heads, d_model):
    """Pure-JAX reference matching the PyTorch forward (mask=None, eval)."""
    wq, bq = params["q"]
    wk, bk = params["k"]
    wv, bv = params["v"]
    wp, bp = params["proj"]
    B, N, _ = x.shape
    _, M, _ = y.shape
    A = wq.shape[1]
    Dh = A // num_heads
    hp = "highest"
    q = jnp.einsum("bnd,da->bna", x, wq, precision=hp) + bq
    k = jnp.einsum("bmd,da->bma", y, wk, precision=hp) + bk
    v = jnp.einsum("bmd,da->bma", y, wv, precision=hp) + bv
    q = q.reshape(B, N, num_heads, Dh).transpose(0, 2, 1, 3)
    k = k.reshape(B, M, num_heads, Dh).transpose(0, 2, 1, 3)
    v = v.reshape(B, M, num_heads, Dh).transpose(0, 2, 1, 3)
    s = jnp.einsum("bhnd,bhmd->bhnm", q, k, precision=hp) * (float(d_model) ** -0.5)
    w = jax.nn.softmax(s, axis=-1)
    ao = jnp.einsum("bhnm,bhmd->bhnd", w, v, precision=hp)
    ao = ao.transpose(0, 2, 1, 3).reshape(B, N, A)
    out = jnp.einsum("bna,ad->bnd", ao, wp, precision=hp) + bp
    return out, w


# ----------------------------- main -----------------------------

if __name__ == "__main__":
    B, N, M = 2, 8, 16          # cross-attention: query len N, key/value len M
    d_model = 128
    attention_dim = 128
    num_heads = 8               # head_dim = 16, H*M = 128 (lane-dense attw slab)

    key = jax.random.PRNGKey(0)
    kx, ky, kp = jax.random.split(key, 3)
    x = jax.random.normal(kx, (B, N, d_model), jnp.float32)
    y = jax.random.normal(ky, (B, M, d_model), jnp.float32)
    params = init_multi_attention_params(kp, d_model, attention_dim)
    prepared = prepare_params(params, d_model)      # one-time weight prep, outside the forward

    ref_out, ref_w = reference_forward(x, y, params, num_heads, d_model)

    # Default path: bf16 MXU operands, f32 accumulation / softmax.
    fwd_bf16 = jax.jit(functools.partial(multi_attention_network,
                                         num_heads=num_heads,
                                         mm_dtype=jnp.bfloat16))
    out, attw = fwd_bf16(x, y, prepared)
    jax.block_until_ready((out, attw))

    assert out.shape == (B, N, d_model)
    assert attw.shape == (B, num_heads, N, M)
    assert bool(jnp.all(jnp.isfinite(out))) and bool(jnp.all(jnp.isfinite(attw)))
    assert bool(jnp.allclose(out, ref_out, rtol=2e-2, atol=2e-2)), \
        f"bf16 max |dout| = {float(jnp.max(jnp.abs(out - ref_out)))}"
    assert bool(jnp.allclose(attw, ref_w, rtol=1e-2, atol=1e-2)), \
        f"bf16 max |dw| = {float(jnp.max(jnp.abs(attw - ref_w)))}"

    # f32 operand path: tight numerical validation of the kernel semantics.
    fwd_f32 = jax.jit(functools.partial(multi_attention_network,
                                        num_heads=num_heads,
                                        mm_dtype=jnp.float32))
    out32, attw32 = fwd_f32(x, y, prepared)
    jax.block_until_ready((out32, attw32))
    assert bool(jnp.allclose(out32, ref_out, rtol=2e-3, atol=2e-3)), \
        f"f32 max |dout| = {float(jnp.max(jnp.abs(out32 - ref_out)))}"
    assert bool(jnp.allclose(attw32, ref_w, rtol=2e-3, atol=2e-3)), \
        f"f32 max |dw| = {float(jnp.max(jnp.abs(attw32 - ref_w)))}"

    print("KERNEL_OK")
</pallas_src>

<mosaic_0001>
module attributes {stable_mosaic.version = 11 : i64} {
  func.func @_mha_kernel(%arg0: i32, %arg1: memref<16x128xf32, #tpu.memory_space<vmem>>, %arg2: memref<32x128xf32, #tpu.memory_space<vmem>>, %arg3: memref<128x128xf32, #tpu.memory_space<vmem>>, %arg4: memref<1x128xf32, #tpu.memory_space<vmem>>, %arg5: memref<128x256xf32, #tpu.memory_space<vmem>>, %arg6: memref<1x256xf32, #tpu.memory_space<vmem>>, %arg7: memref<128x128xf32, #tpu.memory_space<vmem>>, %arg8: memref<1x128xf32, #tpu.memory_space<vmem>>, %arg9: memref<16x128xf32, #tpu.memory_space<vmem>>, %arg10: memref<16x128xf32, #tpu.memory_space<vmem>>) attributes {dimension_semantics = [#tpu.dimension_semantics<parallel>], iteration_bounds = array<i64: 1>, scalar_prefetch = 0 : i64, scratch_operands = 0 : i64, tpu.core_type = #tpu.core_type<tc>, window_params = [{transform_indices = @transform_0, window_bounds = array<i64: 16, 128>}, {transform_indices = @transform_1, window_bounds = array<i64: 32, 128>}, {pipeline_mode = #tpu.pipeline_mode<synchronous>, transform_indices = @transform_2, window_bounds = array<i64: 128, 128>}, {pipeline_mode = #tpu.pipeline_mode<synchronous>, transform_indices = @transform_3, window_bounds = array<i64: 1, 128>}, {pipeline_mode = #tpu.pipeline_mode<synchronous>, transform_indices = @transform_4, window_bounds = array<i64: 128, 256>}, {pipeline_mode = #tpu.pipeline_mode<synchronous>, transform_indices = @transform_5, window_bounds = array<i64: 1, 256>}, {pipeline_mode = #tpu.pipeline_mode<synchronous>, transform_indices = @transform_6, window_bounds = array<i64: 128, 128>}, {pipeline_mode = #tpu.pipeline_mode<synchronous>, transform_indices = @transform_7, window_bounds = array<i64: 1, 128>}, {transform_indices = @transform_8, window_bounds = array<i64: 16, 128>}, {transform_indices = @transform_9, window_bounds = array<i64: 16, 128>}]} {
    %c0 = arith.constant 0 : index
    %c0_0 = arith.constant 0 : index
    %0 = vector.load %arg1[%c0, %c0_0] : memref<16x128xf32, #tpu.memory_space<vmem>>, vector<16x128xf32>
    %c0_1 = arith.constant 0 : index
    %c0_2 = arith.constant 0 : index
    %1 = vector.load %arg2[%c0_1, %c0_2] : memref<32x128xf32, #tpu.memory_space<vmem>>, vector<32x128xf32>
    %2 = arith.truncf %0 : vector<16x128xf32> to vector<16x128xbf16>
    %c0_3 = arith.constant 0 : index
    %c0_4 = arith.constant 0 : index
    %3 = vector.load %arg3[%c0_3, %c0_4] : memref<128x128xf32, #tpu.memory_space<vmem>>, vector<128x128xf32>
    %4 = arith.truncf %3 : vector<128x128xf32> to vector<128x128xbf16>
    %cst = arith.constant dense<0.000000e+00> : vector<16x128xf32>
    %5 = tpu.matmul %2, %4, %cst {dimension_numbers = #tpu.dot_dimension_numbers<[1], [0], [0], [1], [0, 0, 1, 1], [], []>} : vector<16x128xbf16>, vector<128x128xbf16>, vector<16x128xf32> -> vector<16x128xf32>
    %c0_5 = arith.constant 0 : index
    %c0_6 = arith.constant 0 : index
    %6 = vector.load %arg4[%c0_5, %c0_6] : memref<1x128xf32, #tpu.memory_space<vmem>>, vector<1x128xf32>
    %7 = vector.broadcast %6 : vector<1x128xf32> to vector<16x128xf32>
    %8 = arith.addf %5, %7 : vector<16x128xf32>
    %9 = arith.truncf %1 : vector<32x128xf32> to vector<32x128xbf16>
    %c0_7 = arith.constant 0 : index
    %c0_8 = arith.constant 0 : index
    %10 = vector.load %arg5[%c0_7, %c0_8] : memref<128x256xf32, #tpu.memory_space<vmem>>, vector<128x256xf32>
    %11 = arith.truncf %10 : vector<128x256xf32> to vector<128x256xbf16>
    %cst_9 = arith.constant dense<0.000000e+00> : vector<32x256xf32>
    %12 = tpu.matmul %9, %11, %cst_9 {dimension_numbers = #tpu.dot_dimension_numbers<[1], [0], [0], [1], [0, 0, 1, 1], [], []>} : vector<32x128xbf16>, vector<128x256xbf16>, vector<32x256xf32> -> vector<32x256xf32>
    %c0_10 = arith.constant 0 : index
    %c0_11 = arith.constant 0 : index
    %13 = vector.load %arg6[%c0_10, %c0_11] : memref<1x256xf32, #tpu.memory_space<vmem>>, vector<1x256xf32>
    %14 = vector.broadcast %13 : vector<1x256xf32> to vector<32x256xf32>
    %15 = arith.addf %12, %14 : vector<32x256xf32>
    %16 = vector.extract_strided_slice %15 {offsets = [0, 0], sizes = [32, 128], strides = [1, 1]} : vector<32x256xf32> to vector<32x128xf32>
    %17 = vector.extract_strided_slice %15 {offsets = [0, 128], sizes = [32, 128], strides = [1, 1]} : vector<32x256xf32> to vector<32x128xf32>
    %18 = vector.extract_strided_slice %8 {offsets = [0, 0], sizes = [8, 128], strides = [1, 1]} : vector<16x128xf32> to vector<8x128xf32>
    %19 = vector.extract_strided_slice %16 {offsets = [0, 0], sizes = [16, 128], strides = [1, 1]} : vector<32x128xf32> to vector<16x128xf32>
    %20 = vector.extract_strided_slice %17 {offsets = [0, 0], sizes = [16, 128], strides = [1, 1]} : vector<32x128xf32> to vector<16x128xf32>
    %21 = vector.extract_strided_slice %18 {offsets = [0, 0], sizes = [8, 16], strides = [1, 1]} : vector<8x128xf32> to vector<8x16xf32>
    %22 = vector.extract_strided_slice %18 {offsets = [0, 16], sizes = [8, 16], strides = [1, 1]} : vector<8x128xf32> to vector<8x16xf32>
    %23 = vector.extract_strided_slice %18 {offsets = [0, 32], sizes = [8, 16], strides = [1, 1]} : vector<8x128xf32> to vector<8x16xf32>
    %24 = vector.extract_strided_slice %18 {offsets = [0, 48], sizes = [8, 16], strides = [1, 1]} : vector<8x128xf32> to vector<8x16xf32>
    %25 = vector.extract_strided_slice %18 {offsets = [0, 64], sizes = [8, 16], strides = [1, 1]} : vector<8x128xf32> to vector<8x16xf32>
    %26 = vector.extract_strided_slice %18 {offsets = [0, 80], sizes = [8, 16], strides = [1, 1]} : vector<8x128xf32> to vector<8x16xf32>
    %27 = vector.extract_strided_slice %18 {offsets = [0, 96], sizes = [8, 16], strides = [1, 1]} : vector<8x128xf32> to vector<8x16xf32>
    %28 = vector.extract_strided_slice %18 {offsets = [0, 112], sizes = [8, 16], strides = [1, 1]} : vector<8x128xf32> to vector<8x16xf32>
    %29 = vector.shape_cast %21 : vector<8x16xf32> to vector<1x8x16xf32>
    %30 = vector.shape_cast %22 : vector<8x16xf32> to vector<1x8x16xf32>
    %31 = vector.shape_cast %23 : vector<8x16xf32> to vector<1x8x16xf32>
    %32 = vector.shape_cast %24 : vector<8x16xf32> to vector<1x8x16xf32>
    %33 = vector.shape_cast %25 : vector<8x16xf32> to vector<1x8x16xf32>
    %34 = vector.shape_cast %26 : vector<8x16xf32> to vector<1x8x16xf32>
    %35 = vector.shape_cast %27 : vector<8x16xf32> to vector<1x8x16xf32>
    %36 = vector.shape_cast %28 : vector<8x16xf32> to vector<1x8x16xf32>
    %37 = tpu.concatenate %29, %30, %31, %32, %33, %34, %35, %36 in 0 : vector<1x8x16xf32>, vector<1x8x16xf32>, vector<1x8x16xf32>, vector<1x8x16xf32>, vector<1x8x16xf32>, vector<1x8x16xf32>, vector<1x8x16xf32>, vector<1x8x16xf32> -> vector<8x8x16xf32>
    %38 = arith.truncf %37 : vector<8x8x16xf32> to vector<8x8x16xbf16>
    %39 = vector.extract_strided_slice %19 {offsets = [0, 0], sizes = [16, 16], strides = [1, 1]} : vector<16x128xf32> to vector<16x16xf32>
    %40 = vector.extract_strided_slice %19 {offsets = [0, 16], sizes = [16, 16], strides = [1, 1]} : vector<16x128xf32> to vector<16x16xf32>
    %41 = vector.extract_strided_slice %19 {offsets = [0, 32], sizes = [16, 16], strides = [1, 1]} : vector<16x128xf32> to vector<16x16xf32>
    %42 = vector.extract_strided_slice %19 {offsets = [0, 48], sizes = [16, 16], strides = [1, 1]} : vector<16x128xf32> to vector<16x16xf32>
    %43 = vector.extract_strided_slice %19 {offsets = [0, 64], sizes = [16, 16], strides = [1, 1]} : vector<16x128xf32> to vector<16x16xf32>
    %44 = vector.extract_strided_slice %19 {offsets = [0, 80], sizes = [16, 16], strides = [1, 1]} : vector<16x128xf32> to vector<16x16xf32>
    %45 = vector.extract_strided_slice %19 {offsets = [0, 96], sizes = [16, 16], strides = [1, 1]} : vector<16x128xf32> to vector<16x16xf32>
    %46 = vector.extract_strided_slice %19 {offsets = [0, 112], sizes = [16, 16], strides = [1, 1]} : vector<16x128xf32> to vector<16x16xf32>
    %47 = vector.shape_cast %39 : vector<16x16xf32> to vector<1x16x16xf32>
    %48 = vector.shape_cast %40 : vector<16x16xf32> to vector<1x16x16xf32>
    %49 = vector.shape_cast %41 : vector<16x16xf32> to vector<1x16x16xf32>
    %50 = vector.shape_cast %42 : vector<16x16xf32> to vector<1x16x16xf32>
    %51 = vector.shape_cast %43 : vector<16x16xf32> to vector<1x16x16xf32>
    %52 = vector.shape_cast %44 : vector<16x16xf32> to vector<1x16x16xf32>
    %53 = vector.shape_cast %45 : vector<16x16xf32> to vector<1x16x16xf32>
    %54 = vector.shape_cast %46 : vector<16x16xf32> to vector<1x16x16xf32>
    %55 = tpu.concatenate %47, %48, %49, %50, %51, %52, %53, %54 in 0 : vector<1x16x16xf32>, vector<1x16x16xf32>, vector<1x16x16xf32>, vector<1x16x16xf32>, vector<1x16x16xf32>, vector<1x16x16xf32>, vector<1x16x16xf32>, vector<1x16x16xf32> -> vector<8x16x16xf32>
    %56 = arith.truncf %55 : vector<8x16x16xf32> to vector<8x16x16xbf16>
    %57 = vector.extract_strided_slice %20 {offsets = [0, 0], sizes = [16, 16], strides = [1, 1]} : vector<16x128xf32> to vector<16x16xf32>
    %58 = vector.extract_strided_slice %20 {offsets = [0, 16], sizes = [16, 16], strides = [1, 1]} : vector<16x128xf32> to vector<16x16xf32>
    %59 = vector.extract_strided_slice %20 {offsets = [0, 32], sizes = [16, 16], strides = [1, 1]} : vector<16x128xf32> to vector<16x16xf32>
    %60 = vector.extract_strided_slice %20 {offsets = [0, 48], sizes = [16, 16], strides = [1, 1]} : vector<16x128xf32> to vector<16x16xf32>
    %61 = vector.extract_strided_slice %20 {offsets = [0, 64], sizes = [16, 16], strides = [1, 1]} : vector<16x128xf32> to vector<16x16xf32>
    %62 = vector.extract_strided_slice %20 {offsets = [0, 80], sizes = [16, 16], strides = [1, 1]} : vector<16x128xf32> to vector<16x16xf32>
    %63 = vector.extract_strided_slice %20 {offsets = [0, 96], sizes = [16, 16], strides = [1, 1]} : vector<16x128xf32> to vector<16x16xf32>
    %64 = vector.extract_strided_slice %20 {offsets = [0, 112], sizes = [16, 16], strides = [1, 1]} : vector<16x128xf32> to vector<16x16xf32>
    %65 = vector.shape_cast %57 : vector<16x16xf32> to vector<1x16x16xf32>
    %66 = vector.shape_cast %58 : vector<16x16xf32> to vector<1x16x16xf32>
    %67 = vector.shape_cast %59 : vector<16x16xf32> to vector<1x16x16xf32>
    %68 = vector.shape_cast %60 : vector<16x16xf32> to vector<1x16x16xf32>
    %69 = vector.shape_cast %61 : vector<16x16xf32> to vector<1x16x16xf32>
    %70 = vector.shape_cast %62 : vector<16x16xf32> to vector<1x16x16xf32>
    %71 = vector.shape_cast %63 : vector<16x16xf32> to vector<1x16x16xf32>
    %72 = vector.shape_cast %64 : vector<16x16xf32> to vector<1x16x16xf32>
    %73 = tpu.concatenate %65, %66, %67, %68, %69, %70, %71, %72 in 0 : vector<1x16x16xf32>, vector<1x16x16xf32>, vector<1x16x16xf32>, vector<1x16x16xf32>, vector<1x16x16xf32>, vector<1x16x16xf32>, vector<1x16x16xf32>, vector<1x16x16xf32> -> vector<8x16x16xf32>
    %74 = arith.truncf %73 : vector<8x16x16xf32> to vector<8x16x16xbf16>
    "tpu.trace_start"() <{level = 10 : i32, message = "hnd,hmd->hnm"}> : () -> ()
    %cst_12 = arith.constant dense<0.000000e+00> : vector<8x8x16xf32>
    %75 = tpu.matmul %38, %56, %cst_12 {dimension_numbers = #tpu.dot_dimension_numbers<[2], [2], [1], [1], [0, 0, 0, 1, 1, 1], [0], [0]>} : vector<8x8x16xbf16>, vector<8x16x16xbf16>, vector<8x8x16xf32> -> vector<8x8x16xf32>
    "tpu.trace_stop"() : () -> ()
    %cst_13 = arith.constant dense<0xFF800000> : vector<8x8xf32>
    %76 = vector.multi_reduction <maximumf>, %75, %cst_13 [2] : vector<8x8x16xf32> to vector<8x8xf32>
    %77 = vector.shape_cast %76 : vector<8x8xf32> to vector<8x8x1xf32>
    %78 = vector.broadcast %77 : vector<8x8x1xf32> to vector<8x8x16xf32>
    %79 = arith.subf %75, %78 : vector<8x8x16xf32>
    %80 = math.exp %79 : vector<8x8x16xf32>
    %cst_14 = arith.constant dense<0.000000e+00> : vector<8x8xf32>
    %81 = vector.multi_reduction <add>, %80, %cst_14 [2] : vector<8x8x16xf32> to vector<8x8xf32>
    %82 = vector.shape_cast %81 : vector<8x8xf32> to vector<8x8x1xf32>
    %83 = tpu.reciprocal %82 {approx = true} : vector<8x8x1xf32> -> vector<8x8x1xf32>
    %84 = vector.broadcast %83 : vector<8x8x1xf32> to vector<8x8x16xf32>
    %85 = arith.mulf %80, %84 : vector<8x8x16xf32>
    %86 = arith.truncf %85 : vector<8x8x16xf32> to vector<8x8x16xbf16>
    "tpu.trace_start"() <{level = 10 : i32, message = "hnm,hmd->hnd"}> : () -> ()
    %cst_15 = arith.constant dense<0.000000e+00> : vector<8x8x16xf32>
    %87 = tpu.matmul %86, %74, %cst_15 {dimension_numbers = #tpu.dot_dimension_numbers<[2], [1], [1], [2], [0, 0, 0, 1, 1, 2], [0], [0]>} : vector<8x8x16xbf16>, vector<8x16x16xbf16>, vector<8x8x16xf32> -> vector<8x8x16xf32>
    "tpu.trace_stop"() : () -> ()
    %88 = vector.extract_strided_slice %87 {offsets = [0, 0, 0], sizes = [1, 8, 16], strides = [1, 1, 1]} : vector<8x8x16xf32> to vector<1x8x16xf32>
    %89 = vector.shape_cast %88 : vector<1x8x16xf32> to vector<8x16xf32>
    %90 = vector.extract_strided_slice %87 {offsets = [1, 0, 0], sizes = [1, 8, 16], strides = [1, 1, 1]} : vector<8x8x16xf32> to vector<1x8x16xf32>
    %91 = vector.shape_cast %90 : vector<1x8x16xf32> to vector<8x16xf32>
    %92 = vector.extract_strided_slice %87 {offsets = [2, 0, 0], sizes = [1, 8, 16], strides = [1, 1, 1]} : vector<8x8x16xf32> to vector<1x8x16xf32>
    %93 = vector.shape_cast %92 : vector<1x8x16xf32> to vector<8x16xf32>
    %94 = vector.extract_strided_slice %87 {offsets = [3, 0, 0], sizes = [1, 8, 16], strides = [1, 1, 1]} : vector<8x8x16xf32> to vector<1x8x16xf32>
    %95 = vector.shape_cast %94 : vector<1x8x16xf32> to vector<8x16xf32>
    %96 = vector.extract_strided_slice %87 {offsets = [4, 0, 0], sizes = [1, 8, 16], strides = [1, 1, 1]} : vector<8x8x16xf32> to vector<1x8x16xf32>
    %97 = vector.shape_cast %96 : vector<1x8x16xf32> to vector<8x16xf32>
    %98 = vector.extract_strided_slice %87 {offsets = [5, 0, 0], sizes = [1, 8, 16], strides = [1, 1, 1]} : vector<8x8x16xf32> to vector<1x8x16xf32>
    %99 = vector.shape_cast %98 : vector<1x8x16xf32> to vector<8x16xf32>
    %100 = vector.extract_strided_slice %87 {offsets = [6, 0, 0], sizes = [1, 8, 16], strides = [1, 1, 1]} : vector<8x8x16xf32> to vector<1x8x16xf32>
    %101 = vector.shape_cast %100 : vector<1x8x16xf32> to vector<8x16xf32>
    %102 = vector.extract_strided_slice %87 {offsets = [7, 0, 0], sizes = [1, 8, 16], strides = [1, 1, 1]} : vector<8x8x16xf32> to vector<1x8x16xf32>
    %103 = vector.shape_cast %102 : vector<1x8x16xf32> to vector<8x16xf32>
    %104 = tpu.concatenate %89, %91, %93, %95, %97, %99, %101, %103 in 1 : vector<8x16xf32>, vector<8x16xf32>, vector<8x16xf32>, vector<8x16xf32>, vector<8x16xf32>, vector<8x16xf32>, vector<8x16xf32>, vector<8x16xf32> -> vector<8x128xf32>
    %105 = vector.extract_strided_slice %85 {offsets = [0, 0, 0], sizes = [1, 8, 16], strides = [1, 1, 1]} : vector<8x8x16xf32> to vector<1x8x16xf32>
    %106 = vector.shape_cast %105 : vector<1x8x16xf32> to vector<8x16xf32>
    %107 = vector.extract_strided_slice %85 {offsets = [1, 0, 0], sizes = [1, 8, 16], strides = [1, 1, 1]} : vector<8x8x16xf32> to vector<1x8x16xf32>
    %108 = vector.shape_cast %107 : vector<1x8x16xf32> to vector<8x16xf32>
    %109 = vector.extract_strided_slice %85 {offsets = [2, 0, 0], sizes = [1, 8, 16], strides = [1, 1, 1]} : vector<8x8x16xf32> to vector<1x8x16xf32>
    %110 = vector.shape_cast %109 : vector<1x8x16xf32> to vector<8x16xf32>
    %111 = vector.extract_strided_slice %85 {offsets = [3, 0, 0], sizes = [1, 8, 16], strides = [1, 1, 1]} : vector<8x8x16xf32> to vector<1x8x16xf32>
    %112 = vector.shape_cast %111 : vector<1x8x16xf32> to vector<8x16xf32>
    %113 = vector.extract_strided_slice %85 {offsets = [4, 0, 0], sizes = [1, 8, 16], strides = [1, 1, 1]} : vector<8x8x16xf32> to vector<1x8x16xf32>
    %114 = vector.shape_cast %113 : vector<1x8x16xf32> to vector<8x16xf32>
    %115 = vector.extract_strided_slice %85 {offsets = [5, 0, 0], sizes = [1, 8, 16], strides = [1, 1, 1]} : vector<8x8x16xf32> to vector<1x8x16xf32>
    %116 = vector.shape_cast %115 : vector<1x8x16xf32> to vector<8x16xf32>
    %117 = vector.extract_strided_slice %85 {offsets = [6, 0, 0], sizes = [1, 8, 16], strides = [1, 1, 1]} : vector<8x8x16xf32> to vector<1x8x16xf32>
    %118 = vector.shape_cast %117 : vector<1x8x16xf32> to vector<8x16xf32>
    %119 = vector.extract_strided_slice %85 {offsets = [7, 0, 0], sizes = [1, 8, 16], strides = [1, 1, 1]} : vector<8x8x16xf32> to vector<1x8x16xf32>
    %120 = vector.shape_cast %119 : vector<1x8x16xf32> to vector<8x16xf32>
    %121 = tpu.concatenate %106, %108, %110, %112, %114, %116, %118, %120 in 1 : vector<8x16xf32>, vector<8x16xf32>, vector<8x16xf32>, vector<8x16xf32>, vector<8x16xf32>, vector<8x16xf32>, vector<8x16xf32>, vector<8x16xf32> -> vector<8x128xf32>
    %122 = vector.extract_strided_slice %8 {offsets = [8, 0], sizes = [8, 128], strides = [1, 1]} : vector<16x128xf32> to vector<8x128xf32>
    %123 = vector.extract_strided_slice %16 {offsets = [16, 0], sizes = [16, 128], strides = [1, 1]} : vector<32x128xf32> to vector<16x128xf32>
    %124 = vector.extract_strided_slice %17 {offsets = [16, 0], sizes = [16, 128], strides = [1, 1]} : vector<32x128xf32> to vector<16x128xf32>
    %125 = vector.extract_strided_slice %122 {offsets = [0, 0], sizes = [8, 16], strides = [1, 1]} : vector<8x128xf32> to vector<8x16xf32>
    %126 = vector.extract_strided_slice %122 {offsets = [0, 16], sizes = [8, 16], strides = [1, 1]} : vector<8x128xf32> to vector<8x16xf32>
    %127 = vector.extract_strided_slice %122 {offsets = [0, 32], sizes = [8, 16], strides = [1, 1]} : vector<8x128xf32> to vector<8x16xf32>
    %128 = vector.extract_strided_slice %122 {offsets = [0, 48], sizes = [8, 16], strides = [1, 1]} : vector<8x128xf32> to vector<8x16xf32>
    %129 = vector.extract_strided_slice %122 {offsets = [0, 64], sizes = [8, 16], strides = [1, 1]} : vector<8x128xf32> to vector<8x16xf32>
    %130 = vector.extract_strided_slice %122 {offsets = [0, 80], sizes = [8, 16], strides = [1, 1]} : vector<8x128xf32> to vector<8x16xf32>
    %131 = vector.extract_strided_slice %122 {offsets = [0, 96], sizes = [8, 16], strides = [1, 1]} : vector<8x128xf32> to vector<8x16xf32>
    %132 = vector.extract_strided_slice %122 {offsets = [0, 112], sizes = [8, 16], strides = [1, 1]} : vector<8x128xf32> to vector<8x16xf32>
    %133 = vector.shape_cast %125 : vector<8x16xf32> to vector<1x8x16xf32>
    %134 = vector.shape_cast %126 : vector<8x16xf32> to vector<1x8x16xf32>
    %135 = vector.shape_cast %127 : vector<8x16xf32> to vector<1x8x16xf32>
    %136 = vector.shape_cast %128 : vector<8x16xf32> to vector<1x8x16xf32>
    %137 = vector.shape_cast %129 : vector<8x16xf32> to vector<1x8x16xf32>
    %138 = vector.shape_cast %130 : vector<8x16xf32> to vector<1x8x16xf32>
    %139 = vector.shape_cast %131 : vector<8x16xf32> to vector<1x8x16xf32>
    %140 = vector.shape_cast %132 : vector<8x16xf32> to vector<1x8x16xf32>
    %141 = tpu.concatenate %133, %134, %135, %136, %137, %138, %139, %140 in 0 : vector<1x8x16xf32>, vector<1x8x16xf32>, vector<1x8x16xf32>, vector<1x8x16xf32>, vector<1x8x16xf32>, vector<1x8x16xf32>, vector<1x8x16xf32>, vector<1x8x16xf32> -> vector<8x8x16xf32>
    %142 = arith.truncf %141 : vector<8x8x16xf32> to vector<8x8x16xbf16>
    %143 = vector.extract_strided_slice %123 {offsets = [0, 0], sizes = [16, 16], strides = [1, 1]} : vector<16x128xf32> to vector<16x16xf32>
    %144 = vector.extract_strided_slice %123 {offsets = [0, 16], sizes = [16, 16], strides = [1, 1]} : vector<16x128xf32> to vector<16x16xf32>
    %145 = vector.extract_strided_slice %123 {offsets = [0, 32], sizes = [16, 16], strides = [1, 1]} : vector<16x128xf32> to vector<16x16xf32>
    %146 = vector.extract_strided_slice %123 {offsets = [0, 48], sizes = [16, 16], strides = [1, 1]} : vector<16x128xf32> to vector<16x16xf32>
    %147 = vector.extract_strided_slice %123 {offsets = [0, 64], sizes = [16, 16], strides = [1, 1]} : vector<16x128xf32> to vector<16x16xf32>
    %148 = vector.extract_strided_slice %123 {offsets = [0, 80], sizes = [16, 16], strides = [1, 1]} : vector<16x128xf32> to vector<16x16xf32>
    %149 = vector.extract_strided_slice %123 {offsets = [0, 96], sizes = [16, 16], strides = [1, 1]} : vector<16x128xf32> to vector<16x16xf32>
    %150 = vector.extract_strided_slice %123 {offsets = [0, 112], sizes = [16, 16], strides = [1, 1]} : vector<16x128xf32> to vector<16x16xf32>
    %151 = vector.shape_cast %143 : vector<16x16xf32> to vector<1x16x16xf32>
    %152 = vector.shape_cast %144 : vector<16x16xf32> to vector<1x16x16xf32>
    %153 = vector.shape_cast %145 : vector<16x16xf32> to vector<1x16x16xf32>
    %154 = vector.shape_cast %146 : vector<16x16xf32> to vector<1x16x16xf32>
    %155 = vector.shape_cast %147 : vector<16x16xf32> to vector<1x16x16xf32>
    %156 = vector.shape_cast %148 : vector<16x16xf32> to vector<1x16x16xf32>
    %157 = vector.shape_cast %149 : vector<16x16xf32> to vector<1x16x16xf32>
    %158 = vector.shape_cast %150 : vector<16x16xf32> to vector<1x16x16xf32>
    %159 = tpu.concatenate %151, %152, %153, %154, %155, %156, %157, %158 in 0 : vector<1x16x16xf32>, vector<1x16x16xf32>, vector<1x16x16xf32>, vector<1x16x16xf32>, vector<1x16x16xf32>, vector<1x16x16xf32>, vector<1x16x16xf32>, vector<1x16x16xf32> -> vector<8x16x16xf32>
    %160 = arith.truncf %159 : vector<8x16x16xf32> to vector<8x16x16xbf16>
    %161 = vector.extract_strided_slice %124 {offsets = [0, 0], sizes = [16, 16], strides = [1, 1]} : vector<16x128xf32> to vector<16x16xf32>
    %162 = vector.extract_strided_slice %124 {offsets = [0, 16], sizes = [16, 16], strides = [1, 1]} : vector<16x128xf32> to vector<16x16xf32>
    %163 = vector.extract_strided_slice %124 {offsets = [0, 32], sizes = [16, 16], strides = [1, 1]} : vector<16x128xf32> to vector<16x16xf32>
    %164 = vector.extract_strided_slice %124 {offsets = [0, 48], sizes = [16, 16], strides = [1, 1]} : vector<16x128xf32> to vector<16x16xf32>
    %165 = vector.extract_strided_slice %124 {offsets = [0, 64], sizes = [16, 16], strides = [1, 1]} : vector<16x128xf32> to vector<16x16xf32>
    %166 = vector.extract_strided_slice %124 {offsets = [0, 80], sizes = [16, 16], strides = [1, 1]} : vector<16x128xf32> to vector<16x16xf32>
    %167 = vector.extract_strided_slice %124 {offsets = [0, 96], sizes = [16, 16], strides = [1, 1]} : vector<16x128xf32> to vector<16x16xf32>
    %168 = vector.extract_strided_slice %124 {offsets = [0, 112], sizes = [16, 16], strides = [1, 1]} : vector<16x128xf32> to vector<16x16xf32>
    %169 = vector.shape_cast %161 : vector<16x16xf32> to vector<1x16x16xf32>
    %170 = vector.shape_cast %162 : vector<16x16xf32> to vector<1x16x16xf32>
    %171 = vector.shape_cast %163 : vector<16x16xf32> to vector<1x16x16xf32>
    %172 = vector.shape_cast %164 : vector<16x16xf32> to vector<1x16x16xf32>
    %173 = vector.shape_cast %165 : vector<16x16xf32> to vector<1x16x16xf32>
    %174 = vector.shape_cast %166 : vector<16x16xf32> to vector<1x16x16xf32>
    %175 = vector.shape_cast %167 : vector<16x16xf32> to vector<1x16x16xf32>
    %176 = vector.shape_cast %168 : vector<16x16xf32> to vector<1x16x16xf32>
    %177 = tpu.concatenate %169, %170, %171, %172, %173, %174, %175, %176 in 0 : vector<1x16x16xf32>, vector<1x16x16xf32>, vector<1x16x16xf32>, vector<1x16x16xf32>, vector<1x16x16xf32>, vector<1x16x16xf32>, vector<1x16x16xf32>, vector<1x16x16xf32> -> vector<8x16x16xf32>
    %178 = arith.truncf %177 : vector<8x16x16xf32> to vector<8x16x16xbf16>
    "tpu.trace_start"() <{level = 10 : i32, message = "hnd,hmd->hnm"}> : () -> ()
    %cst_16 = arith.constant dense<0.000000e+00> : vector<8x8x16xf32>
    %179 = tpu.matmul %142, %160, %cst_16 {dimension_numbers = #tpu.dot_dimension_numbers<[2], [2], [1], [1], [0, 0, 0, 1, 1, 1], [0], [0]>} : vector<8x8x16xbf16>, vector<8x16x16xbf16>, vector<8x8x16xf32> -> vector<8x8x16xf32>
    "tpu.trace_stop"() : () -> ()
    %cst_17 = arith.constant dense<0xFF800000> : vector<8x8xf32>
    %180 = vector.multi_reduction <maximumf>, %179, %cst_17 [2] : vector<8x8x16xf32> to vector<8x8xf32>
    %181 = vector.shape_cast %180 : vector<8x8xf32> to vector<8x8x1xf32>
    %182 = vector.broadcast %181 : vector<8x8x1xf32> to vector<8x8x16xf32>
    %183 = arith.subf %179, %182 : vector<8x8x16xf32>
    %184 = math.exp %183 : vector<8x8x16xf32>
    %cst_18 = arith.constant dense<0.000000e+00> : vector<8x8xf32>
    %185 = vector.multi_reduction <add>, %184, %cst_18 [2] : vector<8x8x16xf32> to vector<8x8xf32>
    %186 = vector.shape_cast %185 : vector<8x8xf32> to vector<8x8x1xf32>
    %187 = tpu.reciprocal %186 {approx = true} : vector<8x8x1xf32> -> vector<8x8x1xf32>
    %188 = vector.broadcast %187 : vector<8x8x1xf32> to vector<8x8x16xf32>
    %189 = arith.mulf %184, %188 : vector<8x8x16xf32>
    %190 = arith.truncf %189 : vector<8x8x16xf32> to vector<8x8x16xbf16>
    "tpu.trace_start"() <{level = 10 : i32, message = "hnm,hmd->hnd"}> : () -> ()
    %cst_19 = arith.constant dense<0.000000e+00> : vector<8x8x16xf32>
    %191 = tpu.matmul %190, %178, %cst_19 {dimension_numbers = #tpu.dot_dimension_numbers<[2], [1], [1], [2], [0, 0, 0, 1, 1, 2], [0], [0]>} : vector<8x8x16xbf16>, vector<8x16x16xbf16>, vector<8x8x16xf32> -> vector<8x8x16xf32>
    "tpu.trace_stop"() : () -> ()
    %192 = vector.extract_strided_slice %191 {offsets = [0, 0, 0], sizes = [1, 8, 16], strides = [1, 1, 1]} : vector<8x8x16xf32> to vector<1x8x16xf32>
    %193 = vector.shape_cast %192 : vector<1x8x16xf32> to vector<8x16xf32>
    %194 = vector.extract_strided_slice %191 {offsets = [1, 0, 0], sizes = [1, 8, 16], strides = [1, 1, 1]} : vector<8x8x16xf32> to vector<1x8x16xf32>
    %195 = vector.shape_cast %194 : vector<1x8x16xf32> to vector<8x16xf32>
    %196 = vector.extract_strided_slice %191 {offsets = [2, 0, 0], sizes = [1, 8, 16], strides = [1, 1, 1]} : vector<8x8x16xf32> to vector<1x8x16xf32>
    %197 = vector.shape_cast %196 : vector<1x8x16xf32> to vector<8x16xf32>
    %198 = vector.extract_strided_slice %191 {offsets = [3, 0, 0], sizes = [1, 8, 16], strides = [1, 1, 1]} : vector<8x8x16xf32> to vector<1x8x16xf32>
    %199 = vector.shape_cast %198 : vector<1x8x16xf32> to vector<8x16xf32>
    %200 = vector.extract_strided_slice %191 {offsets = [4, 0, 0], sizes = [1, 8, 16], strides = [1, 1, 1]} : vector<8x8x16xf32> to vector<1x8x16xf32>
    %201 = vector.shape_cast %200 : vector<1x8x16xf32> to vector<8x16xf32>
    %202 = vector.extract_strided_slice %191 {offsets = [5, 0, 0], sizes = [1, 8, 16], strides = [1, 1, 1]} : vector<8x8x16xf32> to vector<1x8x16xf32>
    %203 = vector.shape_cast %202 : vector<1x8x16xf32> to vector<8x16xf32>
    %204 = vector.extract_strided_slice %191 {offsets = [6, 0, 0], sizes = [1, 8, 16], strides = [1, 1, 1]} : vector<8x8x16xf32> to vector<1x8x16xf32>
    %205 = vector.shape_cast %204 : vector<1x8x16xf32> to vector<8x16xf32>
    %206 = vector.extract_strided_slice %191 {offsets = [7, 0, 0], sizes = [1, 8, 16], strides = [1, 1, 1]} : vector<8x8x16xf32> to vector<1x8x16xf32>
    %207 = vector.shape_cast %206 : vector<1x8x16xf32> to vector<8x16xf32>
    %208 = tpu.concatenate %193, %195, %197, %199, %201, %203, %205, %207 in 1 : vector<8x16xf32>, vector<8x16xf32>, vector<8x16xf32>, vector<8x16xf32>, vector<8x16xf32>, vector<8x16xf32>, vector<8x16xf32>, vector<8x16xf32> -> vector<8x128xf32>
    %209 = vector.extract_strided_slice %189 {offsets = [0, 0, 0], sizes = [1, 8, 16], strides = [1, 1, 1]} : vector<8x8x16xf32> to vector<1x8x16xf32>
    %210 = vector.shape_cast %209 : vector<1x8x16xf32> to vector<8x16xf32>
    %211 = vector.extract_strided_slice %189 {offsets = [1, 0, 0], sizes = [1, 8, 16], strides = [1, 1, 1]} : vector<8x8x16xf32> to vector<1x8x16xf32>
    %212 = vector.shape_cast %211 : vector<1x8x16xf32> to vector<8x16xf32>
    %213 = vector.extract_strided_slice %189 {offsets = [2, 0, 0], sizes = [1, 8, 16], strides = [1, 1, 1]} : vector<8x8x16xf32> to vector<1x8x16xf32>
    %214 = vector.shape_cast %213 : vector<1x8x16xf32> to vector<8x16xf32>
    %215 = vector.extract_strided_slice %189 {offsets = [3, 0, 0], sizes = [1, 8, 16], strides = [1, 1, 1]} : vector<8x8x16xf32> to vector<1x8x16xf32>
    %216 = vector.shape_cast %215 : vector<1x8x16xf32> to vector<8x16xf32>
    %217 = vector.extract_strided_slice %189 {offsets = [4, 0, 0], sizes = [1, 8, 16], strides = [1, 1, 1]} : vector<8x8x16xf32> to vector<1x8x16xf32>
    %218 = vector.shape_cast %217 : vector<1x8x16xf32> to vector<8x16xf32>
    %219 = vector.extract_strided_slice %189 {offsets = [5, 0, 0], sizes = [1, 8, 16], strides = [1, 1, 1]} : vector<8x8x16xf32> to vector<1x8x16xf32>
    %220 = vector.shape_cast %219 : vector<1x8x16xf32> to vector<8x16xf32>
    %221 = vector.extract_strided_slice %189 {offsets = [6, 0, 0], sizes = [1, 8, 16], strides = [1, 1, 1]} : vector<8x8x16xf32> to vector<1x8x16xf32>
    %222 = vector.shape_cast %221 : vector<1x8x16xf32> to vector<8x16xf32>
    %223 = vector.extract_strided_slice %189 {offsets = [7, 0, 0], sizes = [1, 8, 16], strides = [1, 1, 1]} : vector<8x8x16xf32> to vector<1x8x16xf32>
    %224 = vector.shape_cast %223 : vector<1x8x16xf32> to vector<8x16xf32>
    %225 = tpu.concatenate %210, %212, %214, %216, %218, %220, %222, %224 in 1 : vector<8x16xf32>, vector<8x16xf32>, vector<8x16xf32>, vector<8x16xf32>, vector<8x16xf32>, vector<8x16xf32>, vector<8x16xf32>, vector<8x16xf32> -> vector<8x128xf32>
    %226 = tpu.concatenate %104, %208 in 0 : vector<8x128xf32>, vector<8x128xf32> -> vector<16x128xf32>
    %227 = arith.truncf %226 : vector<16x128xf32> to vector<16x128xbf16>
    %c0_20 = arith.constant 0 : index
    %c0_21 = arith.constant 0 : index
    %228 = vector.load %arg7[%c0_20, %c0_21] : memref<128x128xf32, #tpu.memory_space<vmem>>, vector<128x128xf32>
    %229 = arith.truncf %228 : vector<128x128xf32> to vector<128x128xbf16>
    %cst_22 = arith.constant dense<0.000000e+00> : vector<16x128xf32>
    %230 = tpu.matmul %227, %229, %cst_22 {dimension_numbers = #tpu.dot_dimension_numbers<[1], [0], [0], [1], [0, 0, 1, 1], [], []>} : vector<16x128xbf16>, vector<128x128xbf16>, vector<16x128xf32> -> vector<16x128xf32>
    %c0_23 = arith.constant 0 : index
    %c0_24 = arith.constant 0 : index
    %231 = vector.load %arg8[%c0_23, %c0_24] : memref<1x128xf32, #tpu.memory_space<vmem>>, vector<1x128xf32>
    %232 = vector.broadcast %231 : vector<1x128xf32> to vector<16x128xf32>
    %233 = arith.addf %230, %232 : vector<16x128xf32>
    %c0_25 = arith.constant 0 : index
    %c0_26 = arith.constant 0 : index
    %234 = vector.load %arg9[%c0_25, %c0_26] : memref<16x128xf32, #tpu.memory_space<vmem>>, vector<16x128xf32>
    tpu.vector_store %arg9[%c0_25, %c0_26], %233 {strides = array<i32>} : memref<16x128xf32, #tpu.memory_space<vmem>>, vector<16x128xf32>,
    %235 = tpu.concatenate %121, %225 in 0 : vector<8x128xf32>, vector<8x128xf32> -> vector<16x128xf32>
    %c0_27 = arith.constant 0 : index
    %c0_28 = arith.constant 0 : index
    %236 = vector.load %arg10[%c0_27, %c0_28] : memref<16x128xf32, #tpu.memory_space<vmem>>, vector<16x128xf32>
    tpu.vector_store %arg10[%c0_27, %c0_28], %235 {strides = array<i32>} : memref<16x128xf32, #tpu.memory_space<vmem>>, vector<16x128xf32>,
    return
  }
  func.func @transform_0(%arg0: i32) -> (i32, i32) {
    %c0_i32 = arith.constant 0 : i32
    %c0_i32_0 = arith.constant 0 : i32
    return %arg0, %c0_i32 : i32, i32
  }
  func.func @transform_1(%arg0: i32) -> (i32, i32) {
    %c0_i32 = arith.constant 0 : i32
    %c0_i32_0 = arith.constant 0 : i32
    return %arg0, %c0_i32 : i32, i32
  }
  func.func @transform_2(%arg0: i32) -> (i32, i32) {
    %c0_i32 = arith.constant 0 : i32
    %c0_i32_0 = arith.constant 0 : i32
    %c0_i32_1 = arith.constant 0 : i32
    return %c0_i32, %c0_i32_0 : i32, i32
  }
  func.func @transform_3(%arg0: i32) -> (i32, i32) {
    %c0_i32 = arith.constant 0 : i32
    %c0_i32_0 = arith.constant 0 : i32
    %c0_i32_1 = arith.constant 0 : i32
    return %c0_i32, %c0_i32_0 : i32, i32
  }
  func.func @transform_4(%arg0: i32) -> (i32, i32) {
    %c0_i32 = arith.constant 0 : i32
    %c0_i32_0 = arith.constant 0 : i32
    %c0_i32_1 = arith.constant 0 : i32
    return %c0_i32, %c0_i32_0 : i32, i32
  }
  func.func @transform_5(%arg0: i32) -> (i32, i32) {
    %c0_i32 = arith.constant 0 : i32
    %c0_i32_0 = arith.constant 0 : i32
    %c0_i32_1 = arith.constant 0 : i32
    return %c0_i32, %c0_i32_0 : i32, i32
  }
  func.func @transform_6(%arg0: i32) -> (i32, i32) {
    %c0_i32 = arith.constant 0 : i32
    %c0_i32_0 = arith.constant 0 : i32
    %c0_i32_1 = arith.constant 0 : i32
    return %c0_i32, %c0_i32_0 : i32, i32
  }
  func.func @transform_7(%arg0: i32) -> (i32, i32) {
    %c0_i32 = arith.constant 0 : i32
    %c0_i32_0 = arith.constant 0 : i32
    %c0_i32_1 = arith.constant 0 : i32
    return %c0_i32, %c0_i32_0 : i32, i32
  }
  func.func @transform_8(%arg0: i32) -> (i32, i32) {
    %c0_i32 = arith.constant 0 : i32
    %c0_i32_0 = arith.constant 0 : i32
    return %arg0, %c0_i32 : i32, i32
  }
  func.func @transform_9(%arg0: i32) -> (i32, i32) {
    %c0_i32 = arith.constant 0 : i32
    %c0_i32_0 = arith.constant 0 : i32
    return %arg0, %c0_i32 : i32, i32
  }
}

</mosaic_0001>

<llo_original>
// kernel: multi_attention_network.1
$region0: #{multi_attention_network.1}
  #allocation0 [shape = 'u32[]', space=smem, size = 0x4, offset = 0x4, fixed_abs, tag = 'smem constant byte address 0x4 - core index']
  #allocation1 [shape = 'u32[144,128]{1,0:T(1,128)}', space=vmem, size = 0x12000, scoped, tag = 'internal scratch']
  %s0 = inlined_call_operand.hbm [shape: f32[16,128], index: 0, kind: input, shape index: {}]
  %s1 = inlined_call_operand.hbm [shape: f32[32,128], index: 1, kind: input, shape index: {}]
  %s2 = inlined_call_operand.hbm [shape: f32[128,128], index: 2, kind: input, shape index: {}]
  %s3 = inlined_call_operand.vmem [shape: f32[1,128], index: 3, kind: input, shape index: {}]
  %s4 = inlined_call_operand.hbm [shape: f32[128,256], index: 4, kind: input, shape index: {}]
  %s5 = inlined_call_operand.vmem [shape: f32[1,256], index: 5, kind: input, shape index: {}]
  %s6 = inlined_call_operand.hbm [shape: f32[128,128], index: 6, kind: input, shape index: {}]
  %s7 = inlined_call_operand.vmem [shape: f32[1,128], index: 7, kind: input, shape index: {}]
  %s8 = inlined_call_operand.hbm [shape: f32[16,128], index: 8, kind: output, shape index: {0}]
  %s9 = inlined_call_operand.vmem [shape: f32[16,128], index: 9, kind: output, shape index: {1}]
  %10 = xla_tuple %s8, %s9
  %s11 = sld [smem:[#allocation0]]
  $region70: #{multi_attention_network.1} parent=0
    _
  %s13 = ssub.s32 1, %s11
  %s14 = scalar_select 0, %s13, %s11
  $region1: #{multi_attention_network.1} parent=0
    #allocation2 [shape = 'u8[8192]{0}', space=vmem, size = 0x2000, scoped, tag = 'input window, operand 0, single buffered']
    #allocation3 [shape = 's32[1]{0}', space=sflag, size = 0x4, scoped, tag = 'scoped memory for multi_attention_network.1']
    #allocation4 [shape = 's32[1]{0}', space=sflag, size = 0x4, scoped, tag = 'scoped memory for multi_attention_network.1']
    #allocation5 [shape = 'u8[16384]{0}', space=vmem, size = 0x4000, scoped, tag = 'input window, operand 1, single buffered']
    #allocation6 [shape = 's32[1]{0}', space=sflag, size = 0x4, scoped, tag = 'scoped memory for multi_attention_network.1']
    #allocation7 [shape = 'u8[65536]{0}', space=vmem, size = 0x10000, scoped, tag = 'input window, operand 2, single buffered']
    #allocation8 [shape = 'u8[131072]{0}', space=vmem, size = 0x20000, scoped, tag = 'input window, operand 4, single buffered']
    #allocation9 [shape = 's32[1]{0}', space=sflag, size = 0x4, scoped, tag = 'scoped memory for multi_attention_network.1']
    #allocation10 [shape = 'u8[65536]{0}', space=vmem, size = 0x10000, scoped, tag = 'input window, operand 6, single buffered']
    #allocation11 [shape = 'u8[8192]{0}', space=vmem, size = 0x2000, scoped, tag = 'output window, operand 0, single buffered']
    %15 = vsyncpa [#allocation3], 0
    %16 = vsyncpa [#allocation6], 0
    %17 = vsyncpa [#allocation9], 0
    %18 = vsyncpa [#allocation4], 0
    // Predicated region
    $region2: #{multi_attention_network.1} parent=1 // pred_check
      _
    $region3: #{multi_attention_network.1} parent=1 // pred_check_branch
      %20 = sbr.rel (0) target = $region5
    $region4: #{multi_attention_network.1} parent=1 // pred_region
      %s22 = ssub.s32 256, 256
      %23 = vsyncadd [#allocation3], %s22
      %s24 = sshll.u32 [#allocation2], 4
      %s25 = int_to_ptr.vmem [resolvable:$true] %s24
      %30 = dma.hbm_to_vmem [thread:$0]  %s0, 256, %s25, [#allocation3], 128, 128, 8
    $region5: #{multi_attention_network.1} parent=1 // pred_fallthru
      _
    // Predicated region
    $region6: #{multi_attention_network.1} parent=1 // pred_check
      _
    $region7: #{multi_attention_network.1} parent=1 // pred_check_branch
      %32 = sbr.rel (0) target = $region9
    $region8: #{multi_attention_network.1} parent=1 // pred_region
      %s34 = ssub.s32 512, 512
      %35 = vsyncadd [#allocation6], %s34
      %s36 = sshll.u32 [#allocation5], 4
      %s37 = int_to_ptr.vmem [resolvable:$true] %s36
      %42 = dma.hbm_to_vmem [thread:$0]  %s1, 512, %s37, [#allocation6], 128, 128, 8
    $region9: #{multi_attention_network.1} parent=1 // pred_fallthru
      _
    // Predicated region
    $region10: #{multi_attention_network.1} parent=1 // pred_check
      _
    $region11: #{multi_attention_network.1} parent=1 // pred_check_branch
      %44 = sbr.rel (0) target = $region13
    $region12: #{multi_attention_network.1} parent=1 // pred_region
      %s46 = ssub.s32 2048, 2048
      %47 = vsyncadd [#allocation6], %s46
      %s48 = sshll.u32 [#allocation7], 4
      %s49 = int_to_ptr.vmem [resolvable:$true] %s48
      %54 = dma.hbm_to_vmem [thread:$0]  %s2, 2048, %s49, [#allocation6], 128, 128, 8
    $region13: #{multi_attention_network.1} parent=1 // pred_fallthru
      _
    // Predicated region
    $region14: #{multi_attention_network.1} parent=1 // pred_check
      _
    $region15: #{multi_attention_network.1} parent=1 // pred_check_branch
      %56 = sbr.rel (0) target = $region17
    $region16: #{multi_attention_network.1} parent=1 // pred_region
      _
    $region17: #{multi_attention_network.1} parent=1 // pred_fallthru
      _
    // Predicated region
    $region18: #{multi_attention_network.1} parent=1 // pred_check
      _
    $region19: #{multi_attention_network.1} parent=1 // pred_check_branch
      %58 = sbr.rel (0) target = $region21
    $region20: #{multi_attention_network.1} parent=1 // pred_region
      %s60 = ssub.s32 4096, 4096
      %61 = vsyncadd [#allocation9], %s60
      %s62 = sshll.u32 [#allocation8], 4
      %s63 = int_to_ptr.vmem [resolvable:$true] %s62
      %68 = dma.hbm_to_vmem [thread:$0]  %s4, 4096, %s63, [#allocation9], 256, 256, 16
    $region21: #{multi_attention_network.1} parent=1 // pred_fallthru
      _
    // Predicated region
    $region22: #{multi_attention_network.1} parent=1 // pred_check
      _
    $region23: #{multi_attention_network.1} parent=1 // pred_check_branch
      %70 = sbr.rel (0) target = $region25
    $region24: #{multi_attention_network.1} parent=1 // pred_region
      _
    $region25: #{multi_attention_network.1} parent=1 // pred_fallthru
      _
    // Predicated region
    $region26: #{multi_attention_network.1} parent=1 // pred_check
      _
    $region27: #{multi_attention_network.1} parent=1 // pred_check_branch
      %72 = sbr.rel (0) target = $region29
    $region28: #{multi_attention_network.1} parent=1 // pred_region
      %s74 = ssub.s32 2048, 2048
      %75 = vsyncadd [#allocation9], %s74
      %s76 = sshll.u32 [#allocation10], 4
      %s77 = int_to_ptr.vmem [resolvable:$true] %s76
      %82 = dma.hbm_to_vmem [thread:$0]  %s6, 2048, %s77, [#allocation9], 128, 128, 8
    $region29: #{multi_attention_network.1} parent=1 // pred_fallthru
      _
    // Predicated region
    $region30: #{multi_attention_network.1} parent=1 // pred_check
      _
    $region31: #{multi_attention_network.1} parent=1 // pred_check_branch
      %84 = sbr.rel (0) target = $region33
    $region32: #{multi_attention_network.1} parent=1 // pred_region
      _
    $region33: #{multi_attention_network.1} parent=1 // pred_fallthru
      _
    // Predicated region
    $region34: #{multi_attention_network.1} parent=1 // pred_check
      _
    $region35: #{multi_attention_network.1} parent=1 // pred_check_branch
      %86 = sbr.rel (0) target = $region37
    $region36: #{multi_attention_network.1} parent=1 // pred_region
      %87 = dma.done [#allocation3], 256
    $region37: #{multi_attention_network.1} parent=1 // pred_fallthru
      _
    // Predicated region
    $region38: #{multi_attention_network.1} parent=1 // pred_check
      _
    $region39: #{multi_attention_network.1} parent=1 // pred_check_branch
      %89 = sbr.rel (0) target = $region41
    $region40: #{multi_attention_network.1} parent=1 // pred_region
      %90 = dma.done [#allocation6], 512
    $region41: #{multi_attention_network.1} parent=1 // pred_fallthru
      _
    // Predicated region
    $region42: #{multi_attention_network.1} parent=1 // pred_check
      _
    $region43: #{multi_attention_network.1} parent=1 // pred_check_branch
      %92 = sbr.rel (0) target = $region45
    $region44: #{multi_attention_network.1} parent=1 // pred_region
      %93 = dma.done [#allocation6], 2048
    $region45: #{multi_attention_network.1} parent=1 // pred_fallthru
      _
    // Predicated region
    $region46: #{multi_attention_network.1} parent=1 // pred_check
      _
    $region47: #{multi_attention_network.1} parent=1 // pred_check_branch
      %95 = sbr.rel (0) target = $region49
    $region48: #{multi_attention_network.1} parent=1 // pred_region
      %96 = dma.done [#allocation9], 4096
    $region49: #{multi_attention_network.1} parent=1 // pred_fallthru
      _
    // Predicated region
    $region50: #{multi_attention_network.1} parent=1 // pred_check
      _
    $region51: #{multi_attention_network.1} parent=1 // pred_check_branch
      %98 = sbr.rel (0) target = $region53
    $region52: #{multi_attention_network.1} parent=1 // pred_region
      %99 = dma.done [#allocation9], 2048
    $region53: #{multi_attention_network.1} parent=1 // pred_fallthru
      _
    %v101 = vld [vmem:[#allocation2] sm:$0xff]
    %v102 = vld [vmem:[#allocation2 + $0x8] sm:$0xff]
    %v103 = vld [vmem:[#allocation5] sm:$0xff]
    %v104 = vld [vmem:[#allocation5 + $0x8] sm:$0xff]
    %v105 = vld [vmem:[#allocation5 + $0x10] sm:$0xff]
    %v106 = vld [vmem:[#allocation5 + $0x18] sm:$0xff]
    %v107 = vpack.c.bf16 %v102, %v101
    %v108 = vld [vmem:[#allocation7] sm:$0xff]
    %v109 = vld [vmem:[#allocation7 + $0x8] sm:$0xff]
    %v110 = vld [vmem:[#allocation7 + $0x10] sm:$0xff]
    %v111 = vld [vmem:[#allocation7 + $0x18] sm:$0xff]
    %v112 = vld [vmem:[#allocation7 + $0x20] sm:$0xff]
    %v113 = vld [vmem:[#allocation7 + $0x28] sm:$0xff]
    %v114 = vld [vmem:[#allocation7 + $0x30] sm:$0xff]
    %v115 = vld [vmem:[#allocation7 + $0x38] sm:$0xff]
    %v116 = vld [vmem:[#allocation7 + $0x40] sm:$0xff]
    %v117 = vld [vmem:[#allocation7 + $0x48] sm:$0xff]
    %v118 = vld [vmem:[#allocation7 + $0x50] sm:$0xff]
    %v119 = vld [vmem:[#allocation7 + $0x58] sm:$0xff]
    %v120 = vld [vmem:[#allocation7 + $0x60] sm:$0xff]
    %v121 = vld [vmem:[#allocation7 + $0x68] sm:$0xff]
    %v122 = vld [vmem:[#allocation7 + $0x70] sm:$0xff]
    %v123 = vld [vmem:[#allocation7 + $0x78] sm:$0xff]
    %v124 = vpack.c.bf16 %v109, %v108
    %v125 = vpack.c.bf16 %v111, %v110
    %v126 = vpack.c.bf16 %v113, %v112
    %v127 = vpack.c.bf16 %v115, %v114
    %v128 = vpack.c.bf16 %v117, %v116
    %v129 = vpack.c.bf16 %v119, %v118
    %v130 = vpack.c.bf16 %v121, %v120
    %v131 = vpack.c.bf16 %v123, %v122
    %v132 = vld [vmem:[%s3] sm:$0x1]
    %v134 = vlaneseq
    %v135 = vshrl.u32 %v134, 7
    %v136 = vsub.s32 0, %v135
    %v137 = vrot.slane %v132, %v136
    %139 = vmatprep.subr.bf16.mxu0 0
    %140 = vmatpush1.bf16.msra.mxu0 %v124
    %141 = vmatprep.subr.bf16.mxu0 0
    %142 = vmatpush1.bf16.msra.mxu0 %v125
    %143 = vmatprep.subr.bf16.mxu0 0
    %144 = vmatpush1.bf16.msra.mxu0 %v126
    %145 = vmatprep.subr.bf16.mxu0 0
    %146 = vmatpush1.bf16.msra.mxu0 %v127
    %147 = vmatprep.subr.bf16.mxu0 0
    %148 = vmatpush1.bf16.msra.mxu0 %v128
    %149 = vmatprep.subr.bf16.mxu0 0
    %150 = vmatpush1.bf16.msra.mxu0 %v129
    %151 = vmatprep.subr.bf16.mxu0 0
    %152 = vmatpush1.bf16.msra.mxu0 %v130
    %153 = vmatprep.subr.bf16.mxu0 0
    %154 = vmatpush1.bf16.msra.mxu0 %v131
    %155 = vmatprep.subr.bf16.mxu0 0
    %156 = vmatpush1.bf16.msra.mxu0 0
    %157 = vmatprep.subr.bf16.mxu0 0
    %158 = vmatpush1.bf16.msra.mxu0 0
    %159 = vmatprep.subr.bf16.mxu0 0
    %160 = vmatpush1.bf16.msra.mxu0 0
    %161 = vmatprep.subr.bf16.mxu0 0
    %162 = vmatpush1.bf16.msra.mxu0 0
    %163 = vmatprep.subr.bf16.mxu0 0
    %164 = vmatpush1.bf16.msra.mxu0 0
    %165 = vmatprep.subr.bf16.mxu0 0
    %166 = vmatpush1.bf16.msra.mxu0 0
    %167 = vmatprep.subr.bf16.mxu0 0
    %168 = vmatpush1.bf16.msra.mxu0 0
    %169 = vmatprep.subr.bf16.mxu0 0
    %170 = vmatpush1.bf16.msra.mxu0 0
    %171 = vmatprep.mubr.bf16.mxu0 0
    %172 = vmatmul.mubr.bf16.gmra.mrb[0].mxu0 %v107
    %v173 = vpop.f32.mrb[0].mxu0
    %v174 = vadd.f32 %v137, %v173
    %v175 = vpop.f32.mrb[0].mxu0
    %v176 = vpop.f32.mrb[0].mxu0
    %v177 = vadd.f32 %v137, %v176
    %v178 = vpop.f32.mrb[0].mxu0
    %179 = vdwg.mxu0
    %v180 = vpack.c.bf16 %v104, %v103
    %v181 = vpack.c.bf16 %v106, %v105
    %v182 = vld [vmem:[#allocation8] sm:$0xff]
    %v183 = vld [vmem:[#allocation8 + $0x8] sm:$0xff]
    %v184 = vld [vmem:[#allocation8 + $0x10] sm:$0xff]
    %v185 = vld [vmem:[#allocation8 + $0x18] sm:$0xff]
    %v186 = vld [vmem:[#allocation8 + $0x20] sm:$0xff]
    %v187 = vld [vmem:[#allocation8 + $0x28] sm:$0xff]
    %v188 = vld [vmem:[#allocation8 + $0x30] sm:$0xff]
    %v189 = vld [vmem:[#allocation8 + $0x38] sm:$0xff]
    %v190 = vld [vmem:[#allocation8 + $0x40] sm:$0xff]
    %v191 = vld [vmem:[#allocation8 + $0x48] sm:$0xff]
    %v192 = vld [vmem:[#allocation8 + $0x50] sm:$0xff]
    %v193 = vld [vmem:[#allocation8 + $0x58] sm:$0xff]
    %v194 = vld [vmem:[#allocation8 + $0x60] sm:$0xff]
    %v195 = vld [vmem:[#allocation8 + $0x68] sm:$0xff]
    %v196 = vld [vmem:[#allocation8 + $0x70] sm:$0xff]
    %v197 = vld [vmem:[#allocation8 + $0x78] sm:$0xff]
    %v198 = vld [vmem:[#allocation8 + $0x80] sm:$0xff]
    %v199 = vld [vmem:[#allocation8 + $0x88] sm:$0xff]
    %v200 = vld [vmem:[#allocation8 + $0x90] sm:$0xff]
    %v201 = vld [vmem:[#allocation8 + $0x98] sm:$0xff]
    %v202 = vld [vmem:[#allocation8 + $0xa0] sm:$0xff]
    %v203 = vld [vmem:[#allocation8 + $0xa8] sm:$0xff]
    %v204 = vld [vmem:[#allocation8 + $0xb0] sm:$0xff]
    %v205 = vld [vmem:[#allocation8 + $0xb8] sm:$0xff]
    %v206 = vld [vmem:[#allocation8 + $0xc0] sm:$0xff]
    %v207 = vld [vmem:[#allocation8 + $0xc8] sm:$0xff]
    %v208 = vld [vmem:[#allocation8 + $0xd0] sm:$0xff]
    %v209 = vld [vmem:[#allocation8 + $0xd8] sm:$0xff]
    %v210 = vld [vmem:[#allocation8 + $0xe0] sm:$0xff]
    %v211 = vld [vmem:[#allocation8 + $0xe8] sm:$0xff]
    %v212 = vld [vmem:[#allocation8 + $0xf0] sm:$0xff]
    %v213 = vld [vmem:[#allocation8 + $0xf8] sm:$0xff]
    %v214 = vpack.c.bf16 %v184, %v182
    %v215 = vpack.c.bf16 %v185, %v183
    %v216 = vpack.c.bf16 %v188, %v186
    %v217 = vpack.c.bf16 %v189, %v187
    %v218 = vpack.c.bf16 %v192, %v190
    %v219 = vpack.c.bf16 %v193, %v191
    %v220 = vpack.c.bf16 %v196, %v194
    %v221 = vpack.c.bf16 %v197, %v195
    %v222 = vpack.c.bf16 %v200, %v198
    %v223 = vpack.c.bf16 %v201, %v199
    %v224 = vpack.c.bf16 %v204, %v202
    %v225 = vpack.c.bf16 %v205, %v203
    %v226 = vpack.c.bf16 %v208, %v206
    %v227 = vpack.c.bf16 %v209, %v207
    %v228 = vpack.c.bf16 %v212, %v210
    %v229 = vpack.c.bf16 %v213, %v211
    %v230 = vld [vmem:[%s5] sm:$0x3]
    %v232 = vlaneseq
    %v233 = vshrl.u32 %v232, 7
    %v234 = vsub.s32 0, %v233
    %v235 = vrot.slane %v230, %v234
    %v236 = vlaneseq
    %v237 = vshrl.u32 %v236, 7
    %v238 = vsub.s32 1, %v237
    %v239 = vrot.slane %v230, %v238
    %242 = vmatprep.subr.bf16.mxu0 %v215
    %243 = vmatpush1.bf16.msra.mxu0 %v214
    %244 = vmatprep.subr.bf16.mxu0 %v217
    %245 = vmatpush1.bf16.msra.mxu0 %v216
    %246 = vmatprep.subr.bf16.mxu0 %v219
    %247 = vmatpush1.bf16.msra.mxu0 %v218
    %248 = vmatprep.subr.bf16.mxu0 %v221
    %249 = vmatpush1.bf16.msra.mxu0 %v220
    %250 = vmatprep.subr.bf16.mxu0 %v223
    %251 = vmatpush1.bf16.msra.mxu0 %v222
    %252 = vmatprep.subr.bf16.mxu0 %v225
    %253 = vmatpush1.bf16.msra.mxu0 %v224
    %254 = vmatprep.subr.bf16.mxu0 %v227
    %255 = vmatpush1.bf16.msra.mxu0 %v226
    %256 = vmatprep.subr.bf16.mxu0 %v229
    %257 = vmatpush1.bf16.msra.mxu0 %v228
    %258 = vmatprep.subr.bf16.mxu0 0
    %259 = vmatpush1.bf16.msra.mxu0 0
    %260 = vmatprep.subr.bf16.mxu0 0
    %261 = vmatpush1.bf16.msra.mxu0 0
    %262 = vmatprep.subr.bf16.mxu0 0
    %263 = vmatpush1.bf16.msra.mxu0 0
    %264 = vmatprep.subr.bf16.mxu0 0
    %265 = vmatpush1.bf16.msra.mxu0 0
    %266 = vmatprep.subr.bf16.mxu0 0
    %267 = vmatpush1.bf16.msra.mxu0 0
    %268 = vmatprep.subr.bf16.mxu0 0
    %269 = vmatpush1.bf16.msra.mxu0 0
    %270 = vmatprep.subr.bf16.mxu0 0
    %271 = vmatpush1.bf16.msra.mxu0 0
    %272 = vmatprep.subr.bf16.mxu0 0
    %273 = vmatpush1.bf16.msra.mxu0 0
    %274 = vmatprep.mubr.bf16.mxu0 0
    %275 = vmatmul.mubr.bf16.gmra.mrb[0].mxu0 %v180
    %v276 = vpop.f32.mrb[0].mxu0
    %v277 = vadd.f32 %v235, %v276
    %v278 = vpop.f32.mrb[0].mxu0
    %v279 = vadd.f32 %v239, %v278
    %v280 = vpop.f32.mrb[0].mxu0
    %v281 = vadd.f32 %v235, %v280
    %v282 = vpop.f32.mrb[0].mxu0
    %v283 = vadd.f32 %v239, %v282
    %284 = vmatprep.mubr.bf16.mxu0 0
    %285 = vmatmul.mubr.bf16.gmra.mrb[0].mxu0 %v181
    %v286 = vpop.f32.mrb[0].mxu0
    %v287 = vadd.f32 %v235, %v286
    %v288 = vpop.f32.mrb[0].mxu0
    %v289 = vadd.f32 %v239, %v288
    %v290 = vpop.f32.mrb[0].mxu0
    %v291 = vadd.f32 %v235, %v290
    %v292 = vpop.f32.mrb[0].mxu0
    %v293 = vadd.f32 %v239, %v292
    %294 = vdwg.mxu0
    %296 = vrot.lane.b32.xlu0 %v174, 112
    %v297 = vpop.permute.xlu0 %296
    %299 = vrot.lane.b32.xlu0 %v174, 96
    %v300 = vpop.permute.xlu0 %299
    %302 = vrot.lane.b32.xlu0 %v174, 80
    %v303 = vpop.permute.xlu0 %302
    %305 = vrot.lane.b32.xlu0 %v174, 64
    %v306 = vpop.permute.xlu0 %305
    %308 = vrot.lane.b32.xlu0 %v174, 48
    %v309 = vpop.permute.xlu0 %308
    %311 = vrot.lane.b32.xlu0 %v174, 32
    %v312 = vpop.permute.xlu0 %311
    %314 = vrot.lane.b32.xlu0 %v174, 16
    %v315 = vpop.permute.xlu0 %314
    %v317 = vpack.c.bf16 %v174, %v174
    %v318 = vpack.c.bf16 %v297, %v297
    %v319 = vpack.c.bf16 %v300, %v300
    %v320 = vpack.c.bf16 %v303, %v303
    %v321 = vpack.c.bf16 %v306, %v306
    %v322 = vpack.c.bf16 %v309, %v309
    %v323 = vpack.c.bf16 %v312, %v312
    %v324 = vpack.c.bf16 %v315, %v315
    %327 = vrot.lane.b32.xlu0 %v277, 112
    %v328 = vpop.permute.xlu0 %327
    %329 = vrot.lane.b32.xlu0 %v281, 112
    %v330 = vpop.permute.xlu0 %329
    %333 = vrot.lane.b32.xlu0 %v277, 96
    %v334 = vpop.permute.xlu0 %333
    %335 = vrot.lane.b32.xlu0 %v281, 96
    %v336 = vpop.permute.xlu0 %335
    %339 = vrot.lane.b32.xlu0 %v277, 80
    %v340 = vpop.permute.xlu0 %339
    %341 = vrot.lane.b32.xlu0 %v281, 80
    %v342 = vpop.permute.xlu0 %341
    %345 = vrot.lane.b32.xlu0 %v277, 64
    %v346 = vpop.permute.xlu0 %345
    %347 = vrot.lane.b32.xlu0 %v281, 64
    %v348 = vpop.permute.xlu0 %347
    %351 = vrot.lane.b32.xlu0 %v277, 48
    %v352 = vpop.permute.xlu0 %351
    %353 = vrot.lane.b32.xlu0 %v281, 48
    %v354 = vpop.permute.xlu0 %353
    %357 = vrot.lane.b32.xlu0 %v277, 32
    %v358 = vpop.permute.xlu0 %357
    %359 = vrot.lane.b32.xlu0 %v281, 32
    %v360 = vpop.permute.xlu0 %359
    %363 = vrot.lane.b32.xlu0 %v277, 16
    %v364 = vpop.permute.xlu0 %363
    %365 = vrot.lane.b32.xlu0 %v281, 16
    %v366 = vpop.permute.xlu0 %365
    %v369 = vpack.c.bf16 %v281, %v277
    %v370 = vpack.c.bf16 %v330, %v328
    %v371 = vpack.c.bf16 %v336, %v334
    %v372 = vpack.c.bf16 %v342, %v340
    %v373 = vpack.c.bf16 %v348, %v346
    %v374 = vpack.c.bf16 %v354, %v352
    %v375 = vpack.c.bf16 %v360, %v358
    %v376 = vpack.c.bf16 %v366, %v364
    %379 = vrot.lane.b32.xlu0 %v279, 112
    %v380 = vpop.permute.xlu0 %379
    %381 = vrot.lane.b32.xlu0 %v283, 112
    %v382 = vpop.permute.xlu0 %381
    %385 = vrot.lane.b32.xlu0 %v279, 96
    %v386 = vpop.permute.xlu0 %385
    %387 = vrot.lane.b32.xlu0 %v283, 96
    %v388 = vpop.permute.xlu0 %387
    %391 = vrot.lane.b32.xlu0 %v279, 80
    %v392 = vpop.permute.xlu0 %391
    %393 = vrot.lane.b32.xlu0 %v283, 80
    %v394 = vpop.permute.xlu0 %393
    %397 = vrot.lane.b32.xlu0 %v279, 64
    %v398 = vpop.permute.xlu0 %397
    %399 = vrot.lane.b32.xlu0 %v283, 64
    %v400 = vpop.permute.xlu0 %399
    %403 = vrot.lane.b32.xlu0 %v279, 48
    %v404 = vpop.permute.xlu0 %403
    %405 = vrot.lane.b32.xlu0 %v283, 48
    %v406 = vpop.permute.xlu0 %405
    %409 = vrot.lane.b32.xlu0 %v279, 32
    %v410 = vpop.permute.xlu0 %409
    %411 = vrot.lane.b32.xlu0 %v283, 32
    %v412 = vpop.permute.xlu0 %411
    %415 = vrot.lane.b32.xlu0 %v279, 16
    %v416 = vpop.permute.xlu0 %415
    %417 = vrot.lane.b32.xlu0 %v283, 16
    %v418 = vpop.permute.xlu0 %417
    %v421 = vpack.c.bf16 %v283, %v279
    %v422 = vpack.c.bf16 %v382, %v380
    %v423 = vpack.c.bf16 %v388, %v386
    %v424 = vpack.c.bf16 %v394, %v392
    %v425 = vpack.c.bf16 %v400, %v398
    %v426 = vpack.c.bf16 %v406, %v404
    %v427 = vpack.c.bf16 %v412, %v410
    %v428 = vpack.c.bf16 %v418, %v416
    %vm429 = vcmask 130048
    %v431 = vsel %vm429, %v317, 0
    %v434 = vsel %vm429, %v369, 0
    %436 = vmatprep.subr.bf16.mxu0 0
    %437 = vmatpush1.bf16.xpose.msra.mxu0 %v434
    %438 = vmatprep.subr.bf16.mxu0 0
    %439 = vmatpush1.bf16.xpose.msra.mxu0 0
    %440 = vmatprep.subr.bf16.mxu0 0
    %441 = vmatpush1.bf16.xpose.msra.mxu0 0
    %442 = vmatprep.subr.bf16.mxu0 0
    %443 = vmatpush1.bf16.xpose.msra.mxu0 0
    %444 = vmatprep.subr.bf16.mxu0 0
    %445 = vmatpush1.bf16.xpose.msra.mxu0 0
    %446 = vmatprep.subr.bf16.mxu0 0
    %447 = vmatpush1.bf16.xpose.msra.mxu0 0
    %448 = vmatprep.subr.bf16.mxu0 0
    %449 = vmatpush1.bf16.xpose.msra.mxu0 0
    %450 = vmatprep.subr.bf16.mxu0 0
    %451 = vmatpush1.bf16.xpose.msra.mxu0 0
    %452 = vmatprep.subr.bf16.mxu0 0
    %453 = vmatpush1.bf16.xpose.msra.mxu0 0
    %454 = vmatprep.subr.bf16.mxu0 0
    %455 = vmatpush1.bf16.xpose.msra.mxu0 0
    %456 = vmatprep.subr.bf16.mxu0 0
    %457 = vmatpush1.bf16.xpose.msra.mxu0 0
    %458 = vmatprep.subr.bf16.mxu0 0
    %459 = vmatpush1.bf16.xpose.msra.mxu0 0
    %460 = vmatprep.subr.bf16.mxu0 0
    %461 = vmatpush1.bf16.xpose.msra.mxu0 0
    %462 = vmatprep.subr.bf16.mxu0 0
    %463 = vmatpush1.bf16.xpose.msra.mxu0 0
    %464 = vmatprep.subr.bf16.mxu0 0
    %465 = vmatpush1.bf16.xpose.msra.mxu0 0
    %466 = vmatprep.subr.bf16.mxu0 0
    %467 = vmatpush1.bf16.xpose.msra.mxu0 0
    %468 = vmatprep.mubr.bf16.mxu0 0
    %469 = vmatmul.mubr.bf16.gmra.mrb[0].mxu0 %v431
    %v470 = vpop.f32.mrb[0].mxu0
    %v471 = vadd.f32 0.0, %v470
    %v472 = vpop.f32.mrb[0].mxu0
    %v473 = vpop.f32.mrb[0].mxu0
    %v474 = vpop.f32.mrb[0].mxu0
    %475 = vdwg.mxu0
    %v477 = vsel %vm429, %v318, 0
    %v480 = vsel %vm429, %v370, 0
    %482 = vmatprep.subr.bf16.mxu0 0
    %483 = vmatpush1.bf16.xpose.msra.mxu0 %v480
    %484 = vmatprep.subr.bf16.mxu0 0
    %485 = vmatpush1.bf16.xpose.msra.mxu0 0
    %486 = vmatprep.subr.bf16.mxu0 0
    %487 = vmatpush1.bf16.xpose.msra.mxu0 0
    %488 = vmatprep.subr.bf16.mxu0 0
    %489 = vmatpush1.bf16.xpose.msra.mxu0 0
    %490 = vmatprep.subr.bf16.mxu0 0
    %491 = vmatpush1.bf16.xpose.msra.mxu0 0
    %492 = vmatprep.subr.bf16.mxu0 0
    %493 = vmatpush1.bf16.xpose.msra.mxu0 0
    %494 = vmatprep.subr.bf16.mxu0 0
    %495 = vmatpush1.bf16.xpose.msra.mxu0 0
    %496 = vmatprep.subr.bf16.mxu0 0
    %497 = vmatpush1.bf16.xpose.msra.mxu0 0
    %498 = vmatprep.subr.bf16.mxu0 0
    %499 = vmatpush1.bf16.xpose.msra.mxu0 0
    %500 = vmatprep.subr.bf16.mxu0 0
    %501 = vmatpush1.bf16.xpose.msra.mxu0 0
    %502 = vmatprep.subr.bf16.mxu0 0
    %503 = vmatpush1.bf16.xpose.msra.mxu0 0
    %504 = vmatprep.subr.bf16.mxu0 0
    %505 = vmatpush1.bf16.xpose.msra.mxu0 0
    %506 = vmatprep.subr.bf16.mxu0 0
    %507 = vmatpush1.bf16.xpose.msra.mxu0 0
    %508 = vmatprep.subr.bf16.mxu0 0
    %509 = vmatpush1.bf16.xpose.msra.mxu0 0
    %510 = vmatprep.subr.bf16.mxu0 0
    %511 = vmatpush1.bf16.xpose.msra.mxu0 0
    %512 = vmatprep.subr.bf16.mxu0 0
    %513 = vmatpush1.bf16.xpose.msra.mxu0 0
    %514 = vmatprep.mubr.bf16.mxu0 0
    %515 = vmatmul.mubr.bf16.gmra.mrb[0].mxu0 %v477
    %v516 = vpop.f32.mrb[0].mxu0
    %v517 = vadd.f32 0.0, %v516
    %v518 = vpop.f32.mrb[0].mxu0
    %v519 = vpop.f32.mrb[0].mxu0
    %v520 = vpop.f32.mrb[0].mxu0
    %521 = vdwg.mxu0
    %v523 = vsel %vm429, %v319, 0
    %v526 = vsel %vm429, %v371, 0
    %528 = vmatprep.subr.bf16.mxu0 0
    %529 = vmatpush1.bf16.xpose.msra.mxu0 %v526
    %530 = vmatprep.subr.bf16.mxu0 0
    %531 = vmatpush1.bf16.xpose.msra.mxu0 0
    %532 = vmatprep.subr.bf16.mxu0 0
    %533 = vmatpush1.bf16.xpose.msra.mxu0 0
    %534 = vmatprep.subr.bf16.mxu0 0
    %535 = vmatpush1.bf16.xpose.msra.mxu0 0
    %536 = vmatprep.subr.bf16.mxu0 0
    %537 = vmatpush1.bf16.xpose.msra.mxu0 0
    %538 = vmatprep.subr.bf16.mxu0 0
    %539 = vmatpush1.bf16.xpose.msra.mxu0 0
    %540 = vmatprep.subr.bf16.mxu0 0
    %541 = vmatpush1.bf16.xpose.msra.mxu0 0
    %542 = vmatprep.subr.bf16.mxu0 0
    %543 = vmatpush1.bf16.xpose.msra.mxu0 0
    %544 = vmatprep.subr.bf16.mxu0 0
    %545 = vmatpush1.bf16.xpose.msra.mxu0 0
    %546 = vmatprep.subr.bf16.mxu0 0
    %547 = vmatpush1.bf16.xpose.msra.mxu0 0
    %548 = vmatprep.subr.bf16.mxu0 0
    %549 = vmatpush1.bf16.xpose.msra.mxu0 0
    %550 = vmatprep.subr.bf16.mxu0 0
    %551 = vmatpush1.bf16.xpose.msra.mxu0 0
    %552 = vmatprep.subr.bf16.mxu0 0
    %553 = vmatpush1.bf16.xpose.msra.mxu0 0
    %554 = vmatprep.subr.bf16.mxu0 0
    %555 = vmatpush1.bf16.xpose.msra.mxu0 0
    %556 = vmatprep.subr.bf16.mxu0 0
    %557 = vmatpush1.bf16.xpose.msra.mxu0 0
    %558 = vmatprep.subr.bf16.mxu0 0
    %559 = vmatpush1.bf16.xpose.msra.mxu0 0
    %560 = vmatprep.mubr.bf16.mxu0 0
    %561 = vmatmul.mubr.bf16.gmra.mrb[0].mxu0 %v523
    %v562 = vpop.f32.mrb[0].mxu0
    %v563 = vadd.f32 0.0, %v562
    %v564 = vpop.f32.mrb[0].mxu0
    %v565 = vpop.f32.mrb[0].mxu0
    %v566 = vpop.f32.mrb[0].mxu0
    %567 = vdwg.mxu0
    %v569 = vsel %vm429, %v320, 0
    %v572 = vsel %vm429, %v372, 0
    %574 = vmatprep.subr.bf16.mxu0 0
    %575 = vmatpush1.bf16.xpose.msra.mxu0 %v572
    %576 = vmatprep.subr.bf16.mxu0 0
    %577 = vmatpush1.bf16.xpose.msra.mxu0 0
    %578 = vmatprep.subr.bf16.mxu0 0
    %579 = vmatpush1.bf16.xpose.msra.mxu0 0
    %580 = vmatprep.subr.bf16.mxu0 0
    %581 = vmatpush1.bf16.xpose.msra.mxu0 0
    %582 = vmatprep.subr.bf16.mxu0 0
    %583 = vmatpush1.bf16.xpose.msra.mxu0 0
    %584 = vmatprep.subr.bf16.mxu0 0
    %585 = vmatpush1.bf16.xpose.msra.mxu0 0
    %586 = vmatprep.subr.bf16.mxu0 0
    %587 = vmatpush1.bf16.xpose.msra.mxu0 0
    %588 = vmatprep.subr.bf16.mxu0 0
    %589 = vmatpush1.bf16.xpose.msra.mxu0 0
    %590 = vmatprep.subr.bf16.mxu0 0
    %591 = vmatpush1.bf16.xpose.msra.mxu0 0
    %592 = vmatprep.subr.bf16.mxu0 0
    %593 = vmatpush1.bf16.xpose.msra.mxu0 0
    %594 = vmatprep.subr.bf16.mxu0 0
    %595 = vmatpush1.bf16.xpose.msra.mxu0 0
    %596 = vmatprep.subr.bf16.mxu0 0
    %597 = vmatpush1.bf16.xpose.msra.mxu0 0
    %598 = vmatprep.subr.bf16.mxu0 0
    %599 = vmatpush1.bf16.xpose.msra.mxu0 0
    %600 = vmatprep.subr.bf16.mxu0 0
    %601 = vmatpush1.bf16.xpose.msra.mxu0 0
    %602 = vmatprep.subr.bf16.mxu0 0
    %603 = vmatpush1.bf16.xpose.msra.mxu0 0
    %604 = vmatprep.subr.bf16.mxu0 0
    %605 = vmatpush1.bf16.xpose.msra.mxu0 0
    %606 = vmatprep.mubr.bf16.mxu0 0
    %607 = vmatmul.mubr.bf16.gmra.mrb[0].mxu0 %v569
    %v608 = vpop.f32.mrb[0].mxu0
    %v609 = vadd.f32 0.0, %v608
    %v610 = vpop.f32.mrb[0].mxu0
    %v611 = vpop.f32.mrb[0].mxu0
    %v612 = vpop.f32.mrb[0].mxu0
    %613 = vdwg.mxu0
    %v615 = vsel %vm429, %v321, 0
    %v618 = vsel %vm429, %v373, 0
    %620 = vmatprep.subr.bf16.mxu0 0
    %621 = vmatpush1.bf16.xpose.msra.mxu0 %v618
    %622 = vmatprep.subr.bf16.mxu0 0
    %623 = vmatpush1.bf16.xpose.msra.mxu0 0
    %624 = vmatprep.subr.bf16.mxu0 0
    %625 = vmatpush1.bf16.xpose.msra.mxu0 0
    %626 = vmatprep.subr.bf16.mxu0 0
    %627 = vmatpush1.bf16.xpose.msra.mxu0 0
    %628 = vmatprep.subr.bf16.mxu0 0
    %629 = vmatpush1.bf16.xpose.msra.mxu0 0
    %630 = vmatprep.subr.bf16.mxu0 0
    %631 = vmatpush1.bf16.xpose.msra.mxu0 0
    %632 = vmatprep.subr.bf16.mxu0 0
    %633 = vmatpush1.bf16.xpose.msra.mxu0 0
    %634 = vmatprep.subr.bf16.mxu0 0
    %635 = vmatpush1.bf16.xpose.msra.mxu0 0
    %636 = vmatprep.subr.bf16.mxu0 0
    %637 = vmatpush1.bf16.xpose.msra.mxu0 0
    %638 = vmatprep.subr.bf16.mxu0 0
    %639 = vmatpush1.bf16.xpose.msra.mxu0 0
    %640 = vmatprep.subr.bf16.mxu0 0
    %641 = vmatpush1.bf16.xpose.msra.mxu0 0
    %642 = vmatprep.subr.bf16.mxu0 0
    %643 = vmatpush1.bf16.xpose.msra.mxu0 0
    %644 = vmatprep.subr.bf16.mxu0 0
    %645 = vmatpush1.bf16.xpose.msra.mxu0 0
    %646 = vmatprep.subr.bf16.mxu0 0
    %647 = vmatpush1.bf16.xpose.msra.mxu0 0
    %648 = vmatprep.subr.bf16.mxu0 0
    %649 = vmatpush1.bf16.xpose.msra.mxu0 0
    %650 = vmatprep.subr.bf16.mxu0 0
    %651 = vmatpush1.bf16.xpose.msra.mxu0 0
    %652 = vmatprep.mubr.bf16.mxu0 0
    %653 = vmatmul.mubr.bf16.gmra.mrb[0].mxu0 %v615
    %v654 = vpop.f32.mrb[0].mxu0
    %v655 = vadd.f32 0.0, %v654
    %v656 = vpop.f32.mrb[0].mxu0
    %v657 = vpop.f32.mrb[0].mxu0
    %v658 = vpop.f32.mrb[0].mxu0
    %659 = vdwg.mxu0
    %v661 = vsel %vm429, %v322, 0
    %v664 = vsel %vm429, %v374, 0
    %666 = vmatprep.subr.bf16.mxu0 0
    %667 = vmatpush1.bf16.xpose.msra.mxu0 %v664
    %668 = vmatprep.subr.bf16.mxu0 0
    %669 = vmatpush1.bf16.xpose.msra.mxu0 0
    %670 = vmatprep.subr.bf16.mxu0 0
    %671 = vmatpush1.bf16.xpose.msra.mxu0 0
    %672 = vmatprep.subr.bf16.mxu0 0
    %673 = vmatpush1.bf16.xpose.msra.mxu0 0
    %674 = vmatprep.subr.bf16.mxu0 0
    %675 = vmatpush1.bf16.xpose.msra.mxu0 0
    %676 = vmatprep.subr.bf16.mxu0 0
    %677 = vmatpush1.bf16.xpose.msra.mxu0 0
    %678 = vmatprep.subr.bf16.mxu0 0
    %679 = vmatpush1.bf16.xpose.msra.mxu0 0
    %680 = vmatprep.subr.bf16.mxu0 0
    %681 = vmatpush1.bf16.xpose.msra.mxu0 0
    %682 = vmatprep.subr.bf16.mxu0 0
    %683 = vmatpush1.bf16.xpose.msra.mxu0 0
    %684 = vmatprep.subr.bf16.mxu0 0
    %685 = vmatpush1.bf16.xpose.msra.mxu0 0
    %686 = vmatprep.subr.bf16.mxu0 0
    %687 = vmatpush1.bf16.xpose.msra.mxu0 0
    %688 = vmatprep.subr.bf16.mxu0 0
    %689 = vmatpush1.bf16.xpose.msra.mxu0 0
    %690 = vmatprep.subr.bf16.mxu0 0
    %691 = vmatpush1.bf16.xpose.msra.mxu0 0
    %692 = vmatprep.subr.bf16.mxu0 0
    %693 = vmatpush1.bf16.xpose.msra.mxu0 0
    %694 = vmatprep.subr.bf16.mxu0 0
    %695 = vmatpush1.bf16.xpose.msra.mxu0 0
    %696 = vmatprep.subr.bf16.mxu0 0
    %697 = vmatpush1.bf16.xpose.msra.mxu0 0
    %698 = vmatprep.mubr.bf16.mxu0 0
    %699 = vmatmul.mubr.bf16.gmra.mrb[0].mxu0 %v661
    %v700 = vpop.f32.mrb[0].mxu0
    %v701 = vadd.f32 0.0, %v700
    %v702 = vpop.f32.mrb[0].mxu0
    %v703 = vpop.f32.mrb[0].mxu0
    %v704 = vpop.f32.mrb[0].mxu0
    %705 = vdwg.mxu0
    %v707 = vsel %vm429, %v323, 0
    %v710 = vsel %vm429, %v375, 0
    %712 = vmatprep.subr.bf16.mxu0 0
    %713 = vmatpush1.bf16.xpose.msra.mxu0 %v710
    %714 = vmatprep.subr.bf16.mxu0 0
    %715 = vmatpush1.bf16.xpose.msra.mxu0 0
    %716 = vmatprep.subr.bf16.mxu0 0
    %717 = vmatpush1.bf16.xpose.msra.mxu0 0
    %718 = vmatprep.subr.bf16.mxu0 0
    %719 = vmatpush1.bf16.xpose.msra.mxu0 0
    %720 = vmatprep.subr.bf16.mxu0 0
    %721 = vmatpush1.bf16.xpose.msra.mxu0 0
    %722 = vmatprep.subr.bf16.mxu0 0
    %723 = vmatpush1.bf16.xpose.msra.mxu0 0
    %724 = vmatprep.subr.bf16.mxu0 0
    %725 = vmatpush1.bf16.xpose.msra.mxu0 0
    %726 = vmatprep.subr.bf16.mxu0 0
    %727 = vmatpush1.bf16.xpose.msra.mxu0 0
    %728 = vmatprep.subr.bf16.mxu0 0
    %729 = vmatpush1.bf16.xpose.msra.mxu0 0
    %730 = vmatprep.subr.bf16.mxu0 0
    %731 = vmatpush1.bf16.xpose.msra.mxu0 0
    %732 = vmatprep.subr.bf16.mxu0 0
    %733 = vmatpush1.bf16.xpose.msra.mxu0 0
    %734 = vmatprep.subr.bf16.mxu0 0
    %735 = vmatpush1.bf16.xpose.msra.mxu0 0
    %736 = vmatprep.subr.bf16.mxu0 0
    %737 = vmatpush1.bf16.xpose.msra.mxu0 0
    %738 = vmatprep.subr.bf16.mxu0 0
    %739 = vmatpush1.bf16.xpose.msra.mxu0 0
    %740 = vmatprep.subr.bf16.mxu0 0
    %741 = vmatpush1.bf16.xpose.msra.mxu0 0
    %742 = vmatprep.subr.bf16.mxu0 0
    %743 = vmatpush1.bf16.xpose.msra.mxu0 0
    %744 = vmatprep.mubr.bf16.mxu0 0
    %745 = vmatmul.mubr.bf16.gmra.mrb[0].mxu0 %v707
    %v746 = vpop.f32.mrb[0].mxu0
    %v747 = vadd.f32 0.0, %v746
    %v748 = vpop.f32.mrb[0].mxu0
    %v749 = vpop.f32.mrb[0].mxu0
    %v750 = vpop.f32.mrb[0].mxu0
    %751 = vdwg.mxu0
    %v753 = vsel %vm429, %v324, 0
    %v756 = vsel %vm429, %v376, 0
    %758 = vmatprep.subr.bf16.mxu0 0
    %759 = vmatpush1.bf16.xpose.msra.mxu0 %v756
    %760 = vmatprep.subr.bf16.mxu0 0
    %761 = vmatpush1.bf16.xpose.msra.mxu0 0
    %762 = vmatprep.subr.bf16.mxu0 0
    %763 = vmatpush1.bf16.xpose.msra.mxu0 0
    %764 = vmatprep.subr.bf16.mxu0 0
    %765 = vmatpush1.bf16.xpose.msra.mxu0 0
    %766 = vmatprep.subr.bf16.mxu0 0
    %767 = vmatpush1.bf16.xpose.msra.mxu0 0
    %768 = vmatprep.subr.bf16.mxu0 0
    %769 = vmatpush1.bf16.xpose.msra.mxu0 0
    %770 = vmatprep.subr.bf16.mxu0 0
    %771 = vmatpush1.bf16.xpose.msra.mxu0 0
    %772 = vmatprep.subr.bf16.mxu0 0
    %773 = vmatpush1.bf16.xpose.msra.mxu0 0
    %774 = vmatprep.subr.bf16.mxu0 0
    %775 = vmatpush1.bf16.xpose.msra.mxu0 0
    %776 = vmatprep.subr.bf16.mxu0 0
    %777 = vmatpush1.bf16.xpose.msra.mxu0 0
    %778 = vmatprep.subr.bf16.mxu0 0
    %779 = vmatpush1.bf16.xpose.msra.mxu0 0
    %780 = vmatprep.subr.bf16.mxu0 0
    %781 = vmatpush1.bf16.xpose.msra.mxu0 0
    %782 = vmatprep.subr.bf16.mxu0 0
    %783 = vmatpush1.bf16.xpose.msra.mxu0 0
    %784 = vmatprep.subr.bf16.mxu0 0
    %785 = vmatpush1.bf16.xpose.msra.mxu0 0
    %786 = vmatprep.subr.bf16.mxu0 0
    %787 = vmatpush1.bf16.xpose.msra.mxu0 0
    %788 = vmatprep.subr.bf16.mxu0 0
    %789 = vmatpush1.bf16.xpose.msra.mxu0 0
    %790 = vmatprep.mubr.bf16.mxu0 0
    %791 = vmatmul.mubr.bf16.gmra.mrb[0].mxu0 %v753
    %v792 = vpop.f32.mrb[0].mxu0
    %v793 = vadd.f32 0.0, %v792
    %v794 = vpop.f32.mrb[0].mxu0
    %v795 = vpop.f32.mrb[0].mxu0
    %v796 = vpop.f32.mrb[0].mxu0
    %797 = vdwg.mxu0
    %v798 = vsel %vm429, %v471, -inf
    %799 = vmax.xlane.f32.xlu0 %v798
    %v800 = vpop.xlane.xlu0 %799
    %v801 = vsel %vm429, %v517, -inf
    %802 = vmax.xlane.f32.xlu0 %v801
    %v803 = vpop.xlane.xlu0 %802
    %v804 = vsel %vm429, %v563, -inf
    %805 = vmax.xlane.f32.xlu0 %v804
    %v806 = vpop.xlane.xlu0 %805
    %v807 = vsel %vm429, %v609, -inf
    %808 = vmax.xlane.f32.xlu0 %v807
    %v809 = vpop.xlane.xlu0 %808
    %v810 = vsel %vm429, %v655, -inf
    %811 = vmax.xlane.f32.xlu0 %v810
    %v812 = vpop.xlane.xlu0 %811
    %v813 = vsel %vm429, %v701, -inf
    %814 = vmax.xlane.f32.xlu0 %v813
    %v815 = vpop.xlane.xlu0 %814
    %v816 = vsel %vm429, %v747, -inf
    %817 = vmax.xlane.f32.xlu0 %v816
    %v818 = vpop.xlane.xlu0 %817
    %v819 = vsel %vm429, %v793, -inf
    %820 = vmax.xlane.f32.xlu0 %v819
    %v821 = vpop.xlane.xlu0 %820
    %v822 = vsub.f32 %v471, %v800
    %v823 = vsub.f32 %v517, %v803
    %v824 = vsub.f32 %v563, %v806
    %v825 = vsub.f32 %v609, %v809
    %v826 = vsub.f32 %v655, %v812
    %v827 = vsub.f32 %v701, %v815
    %v828 = vsub.f32 %v747, %v818
    %v829 = vsub.f32 %v793, %v821
    %v830 = vmul.f32 %v822, 1.442695
    %v831 = vpow.pop %v830
    %v832 = vmul.f32 %v823, 1.442695
    %v833 = vpow.pop %v832
    %v834 = vmul.f32 %v824, 1.442695
    %v835 = vpow.pop %v834
    %v836 = vmul.f32 %v825, 1.442695
    %v837 = vpow.pop %v836
    %v838 = vmul.f32 %v826, 1.442695
    %v839 = vpow.pop %v838
    %v840 = vmul.f32 %v827, 1.442695
    %v841 = vpow.pop %v840
    %v842 = vmul.f32 %v828, 1.442695
    %v843 = vpow.pop %v842
    %v844 = vmul.f32 %v829, 1.442695
    %v845 = vpow.pop %v844
    %v846 = vsel %vm429, %v831, 0.0
    %847 = vadd.xlane.f32.xlu0 %v846
    %v848 = vpop.xlane.xlu0 %847
    %v849 = vsel %vm429, %v833, 0.0
    %850 = vadd.xlane.f32.xlu0 %v849
    %v851 = vpop.xlane.xlu0 %850
    %v852 = vsel %vm429, %v835, 0.0
    %853 = vadd.xlane.f32.xlu0 %v852
    %v854 = vpop.xlane.xlu0 %853
    %v855 = vsel %vm429, %v837, 0.0
    %856 = vadd.xlane.f32.xlu0 %v855
    %v857 = vpop.xlane.xlu0 %856
    %v858 = vsel %vm429, %v839, 0.0
    %859 = vadd.xlane.f32.xlu0 %v858
    %v860 = vpop.xlane.xlu0 %859
    %v861 = vsel %vm429, %v841, 0.0
    %862 = vadd.xlane.f32.xlu0 %v861
    %v863 = vpop.xlane.xlu0 %862
    %v864 = vsel %vm429, %v843, 0.0
    %865 = vadd.xlane.f32.xlu0 %v864
    %v866 = vpop.xlane.xlu0 %865
    %v867 = vsel %vm429, %v845, 0.0
    %868 = vadd.xlane.f32.xlu0 %v867
    %v869 = vpop.xlane.xlu0 %868
    %v870 = vrcp.pop %v848
    %v871 = vrcp.pop %v851
    %v872 = vrcp.pop %v854
    %v873 = vrcp.pop %v857
    %v874 = vrcp.pop %v860
    %v875 = vrcp.pop %v863
    %v876 = vrcp.pop %v866
    %v877 = vrcp.pop %v869
    %v878 = vmul.f32 %v831, %v870
    %v879 = vmul.f32 %v833, %v871
    %v880 = vmul.f32 %v835, %v872
    %v881 = vmul.f32 %v837, %v873
    %v882 = vmul.f32 %v839, %v874
    %v883 = vmul.f32 %v841, %v875
    %v884 = vmul.f32 %v843, %v876
    %v885 = vmul.f32 %v845, %v877
    %v886 = vpack.c.bf16 %v878, %v878
    %v887 = vpack.c.bf16 %v879, %v879
    %v888 = vpack.c.bf16 %v880, %v880
    %v889 = vpack.c.bf16 %v881, %v881
    %v890 = vpack.c.bf16 %v882, %v882
    %v891 = vpack.c.bf16 %v883, %v883
    %v892 = vpack.c.bf16 %v884, %v884
    %v893 = vpack.c.bf16 %v885, %v885
    %v895 = vsel %vm429, %v886, 0
    %897 = vmatprep.subr.bf16.mxu0 0
    %898 = vmatpush1.bf16.msra.mxu0 %v421
    %899 = vmatprep.subr.bf16.mxu0 0
    %900 = vmatpush1.bf16.msra.mxu0 0
    %901 = vmatprep.subr.bf16.mxu0 0
    %902 = vmatpush1.bf16.msra.mxu0 0
    %903 = vmatprep.subr.bf16.mxu0 0
    %904 = vmatpush1.bf16.msra.mxu0 0
    %905 = vmatprep.subr.bf16.mxu0 0
    %906 = vmatpush1.bf16.msra.mxu0 0
    %907 = vmatprep.subr.bf16.mxu0 0
    %908 = vmatpush1.bf16.msra.mxu0 0
    %909 = vmatprep.subr.bf16.mxu0 0
    %910 = vmatpush1.bf16.msra.mxu0 0
    %911 = vmatprep.subr.bf16.mxu0 0
    %912 = vmatpush1.bf16.msra.mxu0 0
    %913 = vmatprep.subr.bf16.mxu0 0
    %914 = vmatpush1.bf16.msra.mxu0 0
    %915 = vmatprep.subr.bf16.mxu0 0
    %916 = vmatpush1.bf16.msra.mxu0 0
    %917 = vmatprep.subr.bf16.mxu0 0
    %918 = vmatpush1.bf16.msra.mxu0 0
    %919 = vmatprep.subr.bf16.mxu0 0
    %920 = vmatpush1.bf16.msra.mxu0 0
    %921 = vmatprep.subr.bf16.mxu0 0
    %922 = vmatpush1.bf16.msra.mxu0 0
    %923 = vmatprep.subr.bf16.mxu0 0
    %924 = vmatpush1.bf16.msra.mxu0 0
    %925 = vmatprep.subr.bf16.mxu0 0
    %926 = vmatpush1.bf16.msra.mxu0 0
    %927 = vmatprep.subr.bf16.mxu0 0
    %928 = vmatpush1.bf16.msra.mxu0 0
    %929 = vmatprep.mubr.bf16.mxu0 0
    %930 = vmatmul.mubr.bf16.gmra.mrb[0].mxu0 %v895
    %v931 = vpop.f32.mrb[0].mxu0
    %v932 = vadd.f32 0.0, %v931
    %v933 = vpop.f32.mrb[0].mxu0
    %v934 = vpop.f32.mrb[0].mxu0
    %v935 = vpop.f32.mrb[0].mxu0
    %936 = vdwg.mxu0
    %v938 = vsel %vm429, %v887, 0
    %940 = vmatprep.subr.bf16.mxu0 0
    %941 = vmatpush1.bf16.msra.mxu0 %v422
    %942 = vmatprep.subr.bf16.mxu0 0
    %943 = vmatpush1.bf16.msra.mxu0 0
    %944 = vmatprep.subr.bf16.mxu0 0
    %945 = vmatpush1.bf16.msra.mxu0 0
    %946 = vmatprep.subr.bf16.mxu0 0
    %947 = vmatpush1.bf16.msra.mxu0 0
    %948 = vmatprep.subr.bf16.mxu0 0
    %949 = vmatpush1.bf16.msra.mxu0 0
    %950 = vmatprep.subr.bf16.mxu0 0
    %951 = vmatpush1.bf16.msra.mxu0 0
    %952 = vmatprep.subr.bf16.mxu0 0
    %953 = vmatpush1.bf16.msra.mxu0 0
    %954 = vmatprep.subr.bf16.mxu0 0
    %955 = vmatpush1.bf16.msra.mxu0 0
    %956 = vmatprep.subr.bf16.mxu0 0
    %957 = vmatpush1.bf16.msra.mxu0 0
    %958 = vmatprep.subr.bf16.mxu0 0
    %959 = vmatpush1.bf16.msra.mxu0 0
    %960 = vmatprep.subr.bf16.mxu0 0
    %961 = vmatpush1.bf16.msra.mxu0 0
    %962 = vmatprep.subr.bf16.mxu0 0
    %963 = vmatpush1.bf16.msra.mxu0 0
    %964 = vmatprep.subr.bf16.mxu0 0
    %965 = vmatpush1.bf16.msra.mxu0 0
    %966 = vmatprep.subr.bf16.mxu0 0
    %967 = vmatpush1.bf16.msra.mxu0 0
    %968 = vmatprep.subr.bf16.mxu0 0
    %969 = vmatpush1.bf16.msra.mxu0 0
    %970 = vmatprep.subr.bf16.mxu0 0
    %971 = vmatpush1.bf16.msra.mxu0 0
    %972 = vmatprep.mubr.bf16.mxu0 0
    %973 = vmatmul.mubr.bf16.gmra.mrb[0].mxu0 %v938
    %v974 = vpop.f32.mrb[0].mxu0
    %v975 = vadd.f32 0.0, %v974
    %v976 = vpop.f32.mrb[0].mxu0
    %v977 = vpop.f32.mrb[0].mxu0
    %v978 = vpop.f32.mrb[0].mxu0
    %979 = vdwg.mxu0
    %v981 = vsel %vm429, %v888, 0
    %983 = vmatprep.subr.bf16.mxu0 0
    %984 = vmatpush1.bf16.msra.mxu0 %v423
    %985 = vmatprep.subr.bf16.mxu0 0
    %986 = vmatpush1.bf16.msra.mxu0 0
    %987 = vmatprep.subr.bf16.mxu0 0
    %988 = vmatpush1.bf16.msra.mxu0 0
    %989 = vmatprep.subr.bf16.mxu0 0
    %990 = vmatpush1.bf16.msra.mxu0 0
    %991 = vmatprep.subr.bf16.mxu0 0
    %992 = vmatpush1.bf16.msra.mxu0 0
    %993 = vmatprep.subr.bf16.mxu0 0
    %994 = vmatpush1.bf16.msra.mxu0 0
    %995 = vmatprep.subr.bf16.mxu0 0
    %996 = vmatpush1.bf16.msra.mxu0 0
    %997 = vmatprep.subr.bf16.mxu0 0
    %998 = vmatpush1.bf16.msra.mxu0 0
    %999 = vmatprep.subr.bf16.mxu0 0
    %1000 = vmatpush1.bf16.msra.mxu0 0
    %1001 = vmatprep.subr.bf16.mxu0 0
    %1002 = vmatpush1.bf16.msra.mxu0 0
    %1003 = vmatprep.subr.bf16.mxu0 0
    %1004 = vmatpush1.bf16.msra.mxu0 0
    %1005 = vmatprep.subr.bf16.mxu0 0
    %1006 = vmatpush1.bf16.msra.mxu0 0
    %1007 = vmatprep.subr.bf16.mxu0 0
    %1008 = vmatpush1.bf16.msra.mxu0 0
    %1009 = vmatprep.subr.bf16.mxu0 0
    %1010 = vmatpush1.bf16.msra.mxu0 0
    %1011 = vmatprep.subr.bf16.mxu0 0
    %1012 = vmatpush1.bf16.msra.mxu0 0
    %1013 = vmatprep.subr.bf16.mxu0 0
    %1014 = vmatpush1.bf16.msra.mxu0 0
    %1015 = vmatprep.mubr.bf16.mxu0 0
    %1016 = vmatmul.mubr.bf16.gmra.mrb[0].mxu0 %v981
    %v1017 = vpop.f32.mrb[0].mxu0
    %v1018 = vadd.f32 0.0, %v1017
    %v1019 = vpop.f32.mrb[0].mxu0
    %v1020 = vpop.f32.mrb[0].mxu0
    %v1021 = vpop.f32.mrb[0].mxu0
    %1022 = vdwg.mxu0
    %v1024 = vsel %vm429, %v889, 0
    %1026 = vmatprep.subr.bf16.mxu0 0
    %1027 = vmatpush1.bf16.msra.mxu0 %v424
    %1028 = vmatprep.subr.bf16.mxu0 0
    %1029 = vmatpush1.bf16.msra.mxu0 0
    %1030 = vmatprep.subr.bf16.mxu0 0
    %1031 = vmatpush1.bf16.msra.mxu0 0
    %1032 = vmatprep.subr.bf16.mxu0 0
    %1033 = vmatpush1.bf16.msra.mxu0 0
    %1034 = vmatprep.subr.bf16.mxu0 0
    %1035 = vmatpush1.bf16.msra.mxu0 0
    %1036 = vmatprep.subr.bf16.mxu0 0
    %1037 = vmatpush1.bf16.msra.mxu0 0
    %1038 = vmatprep.subr.bf16.mxu0 0
    %1039 = vmatpush1.bf16.msra.mxu0 0
    %1040 = vmatprep.subr.bf16.mxu0 0
    %1041 = vmatpush1.bf16.msra.mxu0 0
    %1042 = vmatprep.subr.bf16.mxu0 0
    %1043 = vmatpush1.bf16.msra.mxu0 0
    %1044 = vmatprep.subr.bf16.mxu0 0
    %1045 = vmatpush1.bf16.msra.mxu0 0
    %1046 = vmatprep.subr.bf16.mxu0 0
    %1047 = vmatpush1.bf16.msra.mxu0 0
    %1048 = vmatprep.subr.bf16.mxu0 0
    %1049 = vmatpush1.bf16.msra.mxu0 0
    %1050 = vmatprep.subr.bf16.mxu0 0
    %1051 = vmatpush1.bf16.msra.mxu0 0
    %1052 = vmatprep.subr.bf16.mxu0 0
    %1053 = vmatpush1.bf16.msra.mxu0 0
    %1054 = vmatprep.subr.bf16.mxu0 0
    %1055 = vmatpush1.bf16.msra.mxu0 0
    %1056 = vmatprep.subr.bf16.mxu0 0
    %1057 = vmatpush1.bf16.msra.mxu0 0
    %1058 = vmatprep.mubr.bf16.mxu0 0
    %1059 = vmatmul.mubr.bf16.gmra.mrb[0].mxu0 %v1024
    %v1060 = vpop.f32.mrb[0].mxu0
    %v1061 = vadd.f32 0.0, %v1060
    %v1062 = vpop.f32.mrb[0].mxu0
    %v1063 = vpop.f32.mrb[0].mxu0
    %v1064 = vpop.f32.mrb[0].mxu0
    %1065 = vdwg.mxu0
    %v1067 = vsel %vm429, %v890, 0
    %1069 = vmatprep.subr.bf16.mxu0 0
    %1070 = vmatpush1.bf16.msra.mxu0 %v425
    %1071 = vmatprep.subr.bf16.mxu0 0
    %1072 = vmatpush1.bf16.msra.mxu0 0
    %1073 = vmatprep.subr.bf16.mxu0 0
    %1074 = vmatpush1.bf16.msra.mxu0 0
    %1075 = vmatprep.subr.bf16.mxu0 0
    %1076 = vmatpush1.bf16.msra.mxu0 0
    %1077 = vmatprep.subr.bf16.mxu0 0
    %1078 = vmatpush1.bf16.msra.mxu0 0
    %1079 = vmatprep.subr.bf16.mxu0 0
    %1080 = vmatpush1.bf16.msra.mxu0 0
    %1081 = vmatprep.subr.bf16.mxu0 0
    %1082 = vmatpush1.bf16.msra.mxu0 0
    %1083 = vmatprep.subr.bf16.mxu0 0
    %1084 = vmatpush1.bf16.msra.mxu0 0
    %1085 = vmatprep.subr.bf16.mxu0 0
    %1086 = vmatpush1.bf16.msra.mxu0 0
    %1087 = vmatprep.subr.bf16.mxu0 0
    %1088 = vmatpush1.bf16.msra.mxu0 0
    %1089 = vmatprep.subr.bf16.mxu0 0
    %1090 = vmatpush1.bf16.msra.mxu0 0
    %1091 = vmatprep.subr.bf16.mxu0 0
    %1092 = vmatpush1.bf16.msra.mxu0 0
    %1093 = vmatprep.subr.bf16.mxu0 0
    %1094 = vmatpush1.bf16.msra.mxu0 0
    %1095 = vmatprep.subr.bf16.mxu0 0
    %1096 = vmatpush1.bf16.msra.mxu0 0
    %1097 = vmatprep.subr.bf16.mxu0 0
    %1098 = vmatpush1.bf16.msra.mxu0 0
    %1099 = vmatprep.subr.bf16.mxu0 0
    %1100 = vmatpush1.bf16.msra.mxu0 0
    %1101 = vmatprep.mubr.bf16.mxu0 0
    %1102 = vmatmul.mubr.bf16.gmra.mrb[0].mxu0 %v1067
    %v1103 = vpop.f32.mrb[0].mxu0
    %v1104 = vadd.f32 0.0, %v1103
    %v1105 = vpop.f32.mrb[0].mxu0
    %v1106 = vpop.f32.mrb[0].mxu0
    %v1107 = vpop.f32.mrb[0].mxu0
    %1108 = vdwg.mxu0
    %v1110 = vsel %vm429, %v891, 0
    %1112 = vmatprep.subr.bf16.mxu0 0
    %1113 = vmatpush1.bf16.msra.mxu0 %v426
    %1114 = vmatprep.subr.bf16.mxu0 0
    %1115 = vmatpush1.bf16.msra.mxu0 0
    %1116 = vmatprep.subr.bf16.mxu0 0
    %1117 = vmatpush1.bf16.msra.mxu0 0
    %1118 = vmatprep.subr.bf16.mxu0 0
    %1119 = vmatpush1.bf16.msra.mxu0 0
    %1120 = vmatprep.subr.bf16.mxu0 0
    %1121 = vmatpush1.bf16.msra.mxu0 0
    %1122 = vmatprep.subr.bf16.mxu0 0
    %1123 = vmatpush1.bf16.msra.mxu0 0
    %1124 = vmatprep.subr.bf16.mxu0 0
    %1125 = vmatpush1.bf16.msra.mxu0 0
    %1126 = vmatprep.subr.bf16.mxu0 0
    %1127 = vmatpush1.bf16.msra.mxu0 0
    %1128 = vmatprep.subr.bf16.mxu0 0
    %1129 = vmatpush1.bf16.msra.mxu0 0
    %1130 = vmatprep.subr.bf16.mxu0 0
    %1131 = vmatpush1.bf16.msra.mxu0 0
    %1132 = vmatprep.subr.bf16.mxu0 0
    %1133 = vmatpush1.bf16.msra.mxu0 0
    %1134 = vmatprep.subr.bf16.mxu0 0
    %1135 = vmatpush1.bf16.msra.mxu0 0
    %1136 = vmatprep.subr.bf16.mxu0 0
    %1137 = vmatpush1.bf16.msra.mxu0 0
    %1138 = vmatprep.subr.bf16.mxu0 0
    %1139 = vmatpush1.bf16.msra.mxu0 0
    %1140 = vmatprep.subr.bf16.mxu0 0
    %1141 = vmatpush1.bf16.msra.mxu0 0
    %1142 = vmatprep.subr.bf16.mxu0 0
    %1143 = vmatpush1.bf16.msra.mxu0 0
    %1144 = vmatprep.mubr.bf16.mxu0 0
    %1145 = vmatmul.mubr.bf16.gmra.mrb[0].mxu0 %v1110
    %v1146 = vpop.f32.mrb[0].mxu0
    %v1147 = vadd.f32 0.0, %v1146
    %v1148 = vpop.f32.mrb[0].mxu0
    %v1149 = vpop.f32.mrb[0].mxu0
    %v1150 = vpop.f32.mrb[0].mxu0
    %1151 = vdwg.mxu0
    %v1153 = vsel %vm429, %v892, 0
    %1155 = vmatprep.subr.bf16.mxu0 0
    %1156 = vmatpush1.bf16.msra.mxu0 %v427
    %1157 = vmatprep.subr.bf16.mxu0 0
    %1158 = vmatpush1.bf16.msra.mxu0 0
    %1159 = vmatprep.subr.bf16.mxu0 0
    %1160 = vmatpush1.bf16.msra.mxu0 0
    %1161 = vmatprep.subr.bf16.mxu0 0
    %1162 = vmatpush1.bf16.msra.mxu0 0
    %1163 = vmatprep.subr.bf16.mxu0 0
    %1164 = vmatpush1.bf16.msra.mxu0 0
    %1165 = vmatprep.subr.bf16.mxu0 0
    %1166 = vmatpush1.bf16.msra.mxu0 0
    %1167 = vmatprep.subr.bf16.mxu0 0
    %1168 = vmatpush1.bf16.msra.mxu0 0
    %1169 = vmatprep.subr.bf16.mxu0 0
    %1170 = vmatpush1.bf16.msra.mxu0 0
    %1171 = vmatprep.subr.bf16.mxu0 0
    %1172 = vmatpush1.bf16.msra.mxu0 0
    %1173 = vmatprep.subr.bf16.mxu0 0
    %1174 = vmatpush1.bf16.msra.mxu0 0
    %1175 = vmatprep.subr.bf16.mxu0 0
    %1176 = vmatpush1.bf16.msra.mxu0 0
    %1177 = vmatprep.subr.bf16.mxu0 0
    %1178 = vmatpush1.bf16.msra.mxu0 0
    %1179 = vmatprep.subr.bf16.mxu0 0
    %1180 = vmatpush1.bf16.msra.mxu0 0
    %1181 = vmatprep.subr.bf16.mxu0 0
    %1182 = vmatpush1.bf16.msra.mxu0 0
    %1183 = vmatprep.subr.bf16.mxu0 0
    %1184 = vmatpush1.bf16.msra.mxu0 0
    %1185 = vmatprep.subr.bf16.mxu0 0
    %1186 = vmatpush1.bf16.msra.mxu0 0
    %1187 = vmatprep.mubr.bf16.mxu0 0
    %1188 = vmatmul.mubr.bf16.gmra.mrb[0].mxu0 %v1153
    %v1189 = vpop.f32.mrb[0].mxu0
    %v1190 = vadd.f32 0.0, %v1189
    %v1191 = vpop.f32.mrb[0].mxu0
    %v1192 = vpop.f32.mrb[0].mxu0
    %v1193 = vpop.f32.mrb[0].mxu0
    %1194 = vdwg.mxu0
    %v1196 = vsel %vm429, %v893, 0
    %1198 = vmatprep.subr.bf16.mxu0 0
    %1199 = vmatpush1.bf16.msra.mxu0 %v428
    %1200 = vmatprep.subr.bf16.mxu0 0
    %1201 = vmatpush1.bf16.msra.mxu0 0
    %1202 = vmatprep.subr.bf16.mxu0 0
    %1203 = vmatpush1.bf16.msra.mxu0 0
    %1204 = vmatprep.subr.bf16.mxu0 0
    %1205 = vmatpush1.bf16.msra.mxu0 0
    %1206 = vmatprep.subr.bf16.mxu0 0
    %1207 = vmatpush1.bf16.msra.mxu0 0
    %1208 = vmatprep.subr.bf16.mxu0 0
    %1209 = vmatpush1.bf16.msra.mxu0 0
    %1210 = vmatprep.subr.bf16.mxu0 0
    %1211 = vmatpush1.bf16.msra.mxu0 0
    %1212 = vmatprep.subr.bf16.mxu0 0
    %1213 = vmatpush1.bf16.msra.mxu0 0
    %1214 = vmatprep.subr.bf16.mxu0 0
    %1215 = vmatpush1.bf16.msra.mxu0 0
    %1216 = vmatprep.subr.bf16.mxu0 0
    %1217 = vmatpush1.bf16.msra.mxu0 0
    %1218 = vmatprep.subr.bf16.mxu0 0
    %1219 = vmatpush1.bf16.msra.mxu0 0
    %1220 = vmatprep.subr.bf16.mxu0 0
    %1221 = vmatpush1.bf16.msra.mxu0 0
    %1222 = vmatprep.subr.bf16.mxu0 0
    %1223 = vmatpush1.bf16.msra.mxu0 0
    %1224 = vmatprep.subr.bf16.mxu0 0
    %1225 = vmatpush1.bf16.msra.mxu0 0
    %1226 = vmatprep.subr.bf16.mxu0 0
    %1227 = vmatpush1.bf16.msra.mxu0 0
    %1228 = vmatprep.subr.bf16.mxu0 0
    %1229 = vmatpush1.bf16.msra.mxu0 0
    %1230 = vmatprep.mubr.bf16.mxu0 0
    %1231 = vmatmul.mubr.bf16.gmra.mrb[0].mxu0 %v1196
    %v1232 = vpop.f32.mrb[0].mxu0
    %v1233 = vadd.f32 0.0, %v1232
    %v1234 = vpop.f32.mrb[0].mxu0
    %v1235 = vpop.f32.mrb[0].mxu0
    %v1236 = vpop.f32.mrb[0].mxu0
    %1237 = vdwg.mxu0
    %1239 = vrot.lane.b32.xlu0 %v975, 16
    %v1240 = vpop.permute.xlu0 %1239
    %1243 = vrot.lane.b32.xlu0 %v1018, 32
    %v1244 = vpop.permute.xlu0 %1243
    %1247 = vrot.lane.b32.xlu0 %v1061, 48
    %v1248 = vpop.permute.xlu0 %1247
    %1251 = vrot.lane.b32.xlu0 %v1104, 64
    %v1252 = vpop.permute.xlu0 %1251
    %1255 = vrot.lane.b32.xlu0 %v1147, 80
    %v1256 = vpop.permute.xlu0 %1255
    %1259 = vrot.lane.b32.xlu0 %v1190, 96
    %v1260 = vpop.permute.xlu0 %1259
    %1263 = vrot.lane.b32.xlu0 %v1233, 112
    %v1264 = vpop.permute.xlu0 %1263
    %v1266 = vsel %vm429, %v932, %v1240
    %vm1267 = vcmask 261120
    %v1268 = vsel %vm1267, %v1266, %v1244
    %vm1269 = vcmask 392192
    %v1270 = vsel %vm1269, %v1268, %v1248
    %vm1271 = vcmask 523264
    %v1272 = vsel %vm1271, %v1270, %v1252
    %vm1273 = vcmask 654336
    %v1274 = vsel %vm1273, %v1272, %v1256
    %vm1275 = vcmask 785408
    %v1276 = vsel %vm1275, %v1274, %v1260
    %vm1277 = vcmask 916480
    %v1278 = vsel %vm1277, %v1276, %v1264
    %1280 = vrot.lane.b32.xlu0 %v879, 16
    %v1281 = vpop.permute.xlu0 %1280
    %1284 = vrot.lane.b32.xlu0 %v880, 32
    %v1285 = vpop.permute.xlu0 %1284
    %1288 = vrot.lane.b32.xlu0 %v881, 48
    %v1289 = vpop.permute.xlu0 %1288
    %1292 = vrot.lane.b32.xlu0 %v882, 64
    %v1293 = vpop.permute.xlu0 %1292
    %1296 = vrot.lane.b32.xlu0 %v883, 80
    %v1297 = vpop.permute.xlu0 %1296
    %1300 = vrot.lane.b32.xlu0 %v884, 96
    %v1301 = vpop.permute.xlu0 %1300
    %1304 = vrot.lane.b32.xlu0 %v885, 112
    %v1305 = vpop.permute.xlu0 %1304
    %v1307 = vsel %vm429, %v878, %v1281
    %v1308 = vsel %vm1267, %v1307, %v1285
    %v1309 = vsel %vm1269, %v1308, %v1289
    %v1310 = vsel %vm1271, %v1309, %v1293
    %v1311 = vsel %vm1273, %v1310, %v1297
    %v1312 = vsel %vm1275, %v1311, %v1301
    %v1313 = vsel %vm1277, %v1312, %v1305
    %1315 = vrot.lane.b32.xlu0 %v177, 112
    %v1316 = vpop.permute.xlu0 %1315
    %1318 = vrot.lane.b32.xlu0 %v177, 96
    %v1319 = vpop.permute.xlu0 %1318
    %1321 = vrot.lane.b32.xlu0 %v177, 80
    %v1322 = vpop.permute.xlu0 %1321
    %1324 = vrot.lane.b32.xlu0 %v177, 64
    %v1325 = vpop.permute.xlu0 %1324
    %1327 = vrot.lane.b32.xlu0 %v177, 48
    %v1328 = vpop.permute.xlu0 %1327
    %1330 = vrot.lane.b32.xlu0 %v177, 32
    %v1331 = vpop.permute.xlu0 %1330
    %1333 = vrot.lane.b32.xlu0 %v177, 16
    %v1334 = vpop.permute.xlu0 %1333
    %v1336 = vpack.c.bf16 %v177, %v177
    %v1337 = vpack.c.bf16 %v1316, %v1316
    %v1338 = vpack.c.bf16 %v1319, %v1319
    %v1339 = vpack.c.bf16 %v1322, %v1322
    %v1340 = vpack.c.bf16 %v1325, %v1325
    %v1341 = vpack.c.bf16 %v1328, %v1328
    %v1342 = vpack.c.bf16 %v1331, %v1331
    %v1343 = vpack.c.bf16 %v1334, %v1334
    %1346 = vrot.lane.b32.xlu0 %v287, 112
    %v1347 = vpop.permute.xlu0 %1346
    %1348 = vrot.lane.b32.xlu0 %v291, 112
    %v1349 = vpop.permute.xlu0 %1348
    %1352 = vrot.lane.b32.xlu0 %v287, 96
    %v1353 = vpop.permute.xlu0 %1352
    %1354 = vrot.lane.b32.xlu0 %v291, 96
    %v1355 = vpop.permute.xlu0 %1354
    %1358 = vrot.lane.b32.xlu0 %v287, 80
    %v1359 = vpop.permute.xlu0 %1358
    %1360 = vrot.lane.b32.xlu0 %v291, 80
    %v1361 = vpop.permute.xlu0 %1360
    %1364 = vrot.lane.b32.xlu0 %v287, 64
    %v1365 = vpop.permute.xlu0 %1364
    %1366 = vrot.lane.b32.xlu0 %v291, 64
    %v1367 = vpop.permute.xlu0 %1366
    %1370 = vrot.lane.b32.xlu0 %v287, 48
    %v1371 = vpop.permute.xlu0 %1370
    %1372 = vrot.lane.b32.xlu0 %v291, 48
    %v1373 = vpop.permute.xlu0 %1372
    %1376 = vrot.lane.b32.xlu0 %v287, 32
    %v1377 = vpop.permute.xlu0 %1376
    %1378 = vrot.lane.b32.xlu0 %v291, 32
    %v1379 = vpop.permute.xlu0 %1378
    %1382 = vrot.lane.b32.xlu0 %v287, 16
    %v1383 = vpop.permute.xlu0 %1382
    %1384 = vrot.lane.b32.xlu0 %v291, 16
    %v1385 = vpop.permute.xlu0 %1384
    %v1388 = vpack.c.bf16 %v291, %v287
    %v1389 = vpack.c.bf16 %v1349, %v1347
    %v1390 = vpack.c.bf16 %v1355, %v1353
    %v1391 = vpack.c.bf16 %v1361, %v1359
    %v1392 = vpack.c.bf16 %v1367, %v1365
    %v1393 = vpack.c.bf16 %v1373, %v1371
    %v1394 = vpack.c.bf16 %v1379, %v1377
    %v1395 = vpack.c.bf16 %v1385, %v1383
    %1398 = vrot.lane.b32.xlu0 %v289, 112
    %v1399 = vpop.permute.xlu0 %1398
    %1400 = vrot.lane.b32.xlu0 %v293, 112
    %v1401 = vpop.permute.xlu0 %1400
    %1404 = vrot.lane.b32.xlu0 %v289, 96
    %v1405 = vpop.permute.xlu0 %1404
    %1406 = vrot.lane.b32.xlu0 %v293, 96
    %v1407 = vpop.permute.xlu0 %1406
    %1410 = vrot.lane.b32.xlu0 %v289, 80
    %v1411 = vpop.permute.xlu0 %1410
    %1412 = vrot.lane.b32.xlu0 %v293, 80
    %v1413 = vpop.permute.xlu0 %1412
    %1416 = vrot.lane.b32.xlu0 %v289, 64
    %v1417 = vpop.permute.xlu0 %1416
    %1418 = vrot.lane.b32.xlu0 %v293, 64
    %v1419 = vpop.permute.xlu0 %1418
    %1422 = vrot.lane.b32.xlu0 %v289, 48
    %v1423 = vpop.permute.xlu0 %1422
    %1424 = vrot.lane.b32.xlu0 %v293, 48
    %v1425 = vpop.permute.xlu0 %1424
    %1428 = vrot.lane.b32.xlu0 %v289, 32
    %v1429 = vpop.permute.xlu0 %1428
    %1430 = vrot.lane.b32.xlu0 %v293, 32
    %v1431 = vpop.permute.xlu0 %1430
    %1434 = vrot.lane.b32.xlu0 %v289, 16
    %v1435 = vpop.permute.xlu0 %1434
    %1436 = vrot.lane.b32.xlu0 %v293, 16
    %v1437 = vpop.permute.xlu0 %1436
    %v1440 = vpack.c.bf16 %v293, %v289
    %v1441 = vpack.c.bf16 %v1401, %v1399
    %v1442 = vpack.c.bf16 %v1407, %v1405
    %v1443 = vpack.c.bf16 %v1413, %v1411
    %v1444 = vpack.c.bf16 %v1419, %v1417
    %v1445 = vpack.c.bf16 %v1425, %v1423
    %v1446 = vpack.c.bf16 %v1431, %v1429
    %v1447 = vpack.c.bf16 %v1437, %v1435
    %v1449 = vsel %vm429, %v1336, 0
    %v1452 = vsel %vm429, %v1388, 0
    %1454 = vmatprep.subr.bf16.mxu0 0
    %1455 = vmatpush1.bf16.xpose.msra.mxu0 %v1452
    %1456 = vmatprep.subr.bf16.mxu0 0
    %1457 = vmatpush1.bf16.xpose.msra.mxu0 0
    %1458 = vmatprep.subr.bf16.mxu0 0
    %1459 = vmatpush1.bf16.xpose.msra.mxu0 0
    %1460 = vmatprep.subr.bf16.mxu0 0
    %1461 = vmatpush1.bf16.xpose.msra.mxu0 0
    %1462 = vmatprep.subr.bf16.mxu0 0
    %1463 = vmatpush1.bf16.xpose.msra.mxu0 0
    %1464 = vmatprep.subr.bf16.mxu0 0
    %1465 = vmatpush1.bf16.xpose.msra.mxu0 0
    %1466 = vmatprep.subr.bf16.mxu0 0
    %1467 = vmatpush1.bf16.xpose.msra.mxu0 0
    %1468 = vmatprep.subr.bf16.mxu0 0
    %1469 = vmatpush1.bf16.xpose.msra.mxu0 0
    %1470 = vmatprep.subr.bf16.mxu0 0
    %1471 = vmatpush1.bf16.xpose.msra.mxu0 0
    %1472 = vmatprep.subr.bf16.mxu0 0
    %1473 = vmatpush1.bf16.xpose.msra.mxu0 0
    %1474 = vmatprep.subr.bf16.mxu0 0
    %1475 = vmatpush1.bf16.xpose.msra.mxu0 0
    %1476 = vmatprep.subr.bf16.mxu0 0
    %1477 = vmatpush1.bf16.xpose.msra.mxu0 0
    %1478 = vmatprep.subr.bf16.mxu0 0
    %1479 = vmatpush1.bf16.xpose.msra.mxu0 0
    %1480 = vmatprep.subr.bf16.mxu0 0
    %1481 = vmatpush1.bf16.xpose.msra.mxu0 0
    %1482 = vmatprep.subr.bf16.mxu0 0
    %1483 = vmatpush1.bf16.xpose.msra.mxu0 0
    %1484 = vmatprep.subr.bf16.mxu0 0
    %1485 = vmatpush1.bf16.xpose.msra.mxu0 0
    %1486 = vmatprep.mubr.bf16.mxu0 0
    %1487 = vmatmul.mubr.bf16.gmra.mrb[0].mxu0 %v1449
    %v1488 = vpop.f32.mrb[0].mxu0
    %v1489 = vadd.f32 0.0, %v1488
    %v1490 = vpop.f32.mrb[0].mxu0
    %v1491 = vpop.f32.mrb[0].mxu0
    %v1492 = vpop.f32.mrb[0].mxu0
    %1493 = vdwg.mxu0
    %v1495 = vsel %vm429, %v1337, 0
    %v1498 = vsel %vm429, %v1389, 0
    %1500 = vmatprep.subr.bf16.mxu0 0
    %1501 = vmatpush1.bf16.xpose.msra.mxu0 %v1498
    %1502 = vmatprep.subr.bf16.mxu0 0
    %1503 = vmatpush1.bf16.xpose.msra.mxu0 0
    %1504 = vmatprep.subr.bf16.mxu0 0
    %1505 = vmatpush1.bf16.xpose.msra.mxu0 0
    %1506 = vmatprep.subr.bf16.mxu0 0
    %1507 = vmatpush1.bf16.xpose.msra.mxu0 0
    %1508 = vmatprep.subr.bf16.mxu0 0
    %1509 = vmatpush1.bf16.xpose.msra.mxu0 0
    %1510 = vmatprep.subr.bf16.mxu0 0
    %1511 = vmatpush1.bf16.xpose.msra.mxu0 0
    %1512 = vmatprep.subr.bf16.mxu0 0
    %1513 = vmatpush1.bf16.xpose.msra.mxu0 0
    %1514 = vmatprep.subr.bf16.mxu0 0
    %1515 = vmatpush1.bf16.xpose.msra.mxu0 0
    %1516 = vmatprep.subr.bf16.mxu0 0
    %1517 = vmatpush1.bf16.xpose.msra.mxu0 0
    %1518 = vmatprep.subr.bf16.mxu0 0
    %1519 = vmatpush1.bf16.xpose.msra.mxu0 0
    %1520 = vmatprep.subr.bf16.mxu0 0
    %1521 = vmatpush1.bf16.xpose.msra.mxu0 0
    %1522 = vmatprep.subr.bf16.mxu0 0
    %1523 = vmatpush1.bf16.xpose.msra.mxu0 0
    %1524 = vmatprep.subr.bf16.mxu0 0
    %1525 = vmatpush1.bf16.xpose.msra.mxu0 0
    %1526 = vmatprep.subr.bf16.mxu0 0
    %1527 = vmatpush1.bf16.xpose.msra.mxu0 0
    %1528 = vmatprep.subr.bf16.mxu0 0
    %1529 = vmatpush1.bf16.xpose.msra.mxu0 0
    %1530 = vmatprep.subr.bf16.mxu0 0
    %1531 = vmatpush1.bf16.xpose.msra.mxu0 0
    %1532 = vmatprep.mubr.bf16.mxu0 0
    %1533 = vmatmul.mubr.bf16.gmra.mrb[0].mxu0 %v1495
    %v1534 = vpop.f32.mrb[0].mxu0
    %v1535 = vadd.f32 0.0, %v1534
    %v1536 = vpop.f32.mrb[0].mxu0
    %v1537 = vpop.f32.mrb[0].mxu0
    %v1538 = vpop.f32.mrb[0].mxu0
    %1539 = vdwg.mxu0
    %v1541 = vsel %vm429, %v1338, 0
    %v1544 = vsel %vm429, %v1390, 0
    %1546 = vmatprep.subr.bf16.mxu0 0
    %1547 = vmatpush1.bf16.xpose.msra.mxu0 %v1544
    %1548 = vmatprep.subr.bf16.mxu0 0
    %1549 = vmatpush1.bf16.xpose.msra.mxu0 0
    %1550 = vmatprep.subr.bf16.mxu0 0
    %1551 = vmatpush1.bf16.xpose.msra.mxu0 0
    %1552 = vmatprep.subr.bf16.mxu0 0
    %1553 = vmatpush1.bf16.xpose.msra.mxu0 0
    %1554 = vmatprep.subr.bf16.mxu0 0
    %1555 = vmatpush1.bf16.xpose.msra.mxu0 0
    %1556 = vmatprep.subr.bf16.mxu0 0
    %1557 = vmatpush1.bf16.xpose.msra.mxu0 0
    %1558 = vmatprep.subr.bf16.mxu0 0
    %1559 = vmatpush1.bf16.xpose.msra.mxu0 0
    %1560 = vmatprep.subr.bf16.mxu0 0
    %1561 = vmatpush1.bf16.xpose.msra.mxu0 0
    %1562 = vmatprep.subr.bf16.mxu0 0
    %1563 = vmatpush1.bf16.xpose.msra.mxu0 0
    %1564 = vmatprep.subr.bf16.mxu0 0
    %1565 = vmatpush1.bf16.xpose.msra.mxu0 0
    %1566 = vmatprep.subr.bf16.mxu0 0
    %1567 = vmatpush1.bf16.xpose.msra.mxu0 0
    %1568 = vmatprep.subr.bf16.mxu0 0
    %1569 = vmatpush1.bf16.xpose.msra.mxu0 0
    %1570 = vmatprep.subr.bf16.mxu0 0
    %1571 = vmatpush1.bf16.xpose.msra.mxu0 0
    %1572 = vmatprep.subr.bf16.mxu0 0
    %1573 = vmatpush1.bf16.xpose.msra.mxu0 0
    %1574 = vmatprep.subr.bf16.mxu0 0
    %1575 = vmatpush1.bf16.xpose.msra.mxu0 0
    %1576 = vmatprep.subr.bf16.mxu0 0
    %1577 = vmatpush1.bf16.xpose.msra.mxu0 0
    %1578 = vmatprep.mubr.bf16.mxu0 0
    %1579 = vmatmul.mubr.bf16.gmra.mrb[0].mxu0 %v1541
    %v1580 = vpop.f32.mrb[0].mxu0
    %v1581 = vadd.f32 0.0, %v1580
    %v1582 = vpop.f32.mrb[0].mxu0
    %v1583 = vpop.f32.mrb[0].mxu0
    %v1584 = vpop.f32.mrb[0].mxu0
    %1585 = vdwg.mxu0
    %v1587 = vsel %vm429, %v1339, 0
    %v1590 = vsel %vm429, %v1391, 0
    %1592 = vmatprep.subr.bf16.mxu0 0
    %1593 = vmatpush1.bf16.xpose.msra.mxu0 %v1590
    %1594 = vmatprep.subr.bf16.mxu0 0
    %1595 = vmatpush1.bf16.xpose.msra.mxu0 0
    %1596 = vmatprep.subr.bf16.mxu0 0
    %1597 = vmatpush1.bf16.xpose.msra.mxu0 0
    %1598 = vmatprep.subr.bf16.mxu0 0
    %1599 = vmatpush1.bf16.xpose.msra.mxu0 0
    %1600 = vmatprep.subr.bf16.mxu0 0
    %1601 = vmatpush1.bf16.xpose.msra.mxu0 0
    %1602 = vmatprep.subr.bf16.mxu0 0
    %1603 = vmatpush1.bf16.xpose.msra.mxu0 0
    %1604 = vmatprep.subr.bf16.mxu0 0
    %1605 = vmatpush1.bf16.xpose.msra.mxu0 0
    %1606 = vmatprep.subr.bf16.mxu0 0
    %1607 = vmatpush1.bf16.xpose.msra.mxu0 0
    %1608 = vmatprep.subr.bf16.mxu0 0
    %1609 = vmatpush1.bf16.xpose.msra.mxu0 0
    %1610 = vmatprep.subr.bf16.mxu0 0
    %1611 = vmatpush1.bf16.xpose.msra.mxu0 0
    %1612 = vmatprep.subr.bf16.mxu0 0
    %1613 = vmatpush1.bf16.xpose.msra.mxu0 0
    %1614 = vmatprep.subr.bf16.mxu0 0
    %1615 = vmatpush1.bf16.xpose.msra.mxu0 0
    %1616 = vmatprep.subr.bf16.mxu0 0
    %1617 = vmatpush1.bf16.xpose.msra.mxu0 0
    %1618 = vmatprep.subr.bf16.mxu0 0
    %1619 = vmatpush1.bf16.xpose.msra.mxu0 0
    %1620 = vmatprep.subr.bf16.mxu0 0
    %1621 = vmatpush1.bf16.xpose.msra.mxu0 0
    %1622 = vmatprep.subr.bf16.mxu0 0
    %1623 = vmatpush1.bf16.xpose.msra.mxu0 0
    %1624 = vmatprep.mubr.bf16.mxu0 0
    %1625 = vmatmul.mubr.bf16.gmra.mrb[0].mxu0 %v1587
    %v1626 = vpop.f32.mrb[0].mxu0
    %v1627 = vadd.f32 0.0, %v1626
    %v1628 = vpop.f32.mrb[0].mxu0
    %v1629 = vpop.f32.mrb[0].mxu0
    %v1630 = vpop.f32.mrb[0].mxu0
    %1631 = vdwg.mxu0
    %v1633 = vsel %vm429, %v1340, 0
    %v1636 = vsel %vm429, %v1392, 0
    %1638 = vmatprep.subr.bf16.mxu0 0
    %1639 = vmatpush1.bf16.xpose.msra.mxu0 %v1636
    %1640 = vmatprep.subr.bf16.mxu0 0
    %1641 = vmatpush1.bf16.xpose.msra.mxu0 0
    %1642 = vmatprep.subr.bf16.mxu0 0
    %1643 = vmatpush1.bf16.xpose.msra.mxu0 0
    %1644 = vmatprep.subr.bf16.mxu0 0
    %1645 = vmatpush1.bf16.xpose.msra.mxu0 0
    %1646 = vmatprep.subr.bf16.mxu0 0
    %1647 = vmatpush1.bf16.xpose.msra.mxu0 0
    %1648 = vmatprep.subr.bf16.mxu0 0
    %1649 = vmatpush1.bf16.xpose.msra.mxu0 0
    %1650 = vmatprep.subr.bf16.mxu0 0
    %1651 = vmatpush1.bf16.xpose.msra.mxu0 0
    %1652 = vmatprep.subr.bf16.mxu0 0
    %1653 = vmatpush1.bf16.xpose.msra.mxu0 0
    %1654 = vmatprep.subr.bf16.mxu0 0
    %1655 = vmatpush1.bf16.xpose.msra.mxu0 0
    %1656 = vmatprep.subr.bf16.mxu0 0
    %1657 = vmatpush1.bf16.xpose.msra.mxu0 0
    %1658 = vmatprep.subr.bf16.mxu0 0
    %1659 = vmatpush1.bf16.xpose.msra.mxu0 0
    %1660 = vmatprep.subr.bf16.mxu0 0
    %1661 = vmatpush1.bf16.xpose.msra.mxu0 0
    %1662 = vmatprep.subr.bf16.mxu0 0
    %1663 = vmatpush1.bf16.xpose.msra.mxu0 0
    %1664 = vmatprep.subr.bf16.mxu0 0
    %1665 = vmatpush1.bf16.xpose.msra.mxu0 0
    %1666 = vmatprep.subr.bf16.mxu0 0
    %1667 = vmatpush1.bf16.xpose.msra.mxu0 0
    %1668 = vmatprep.subr.bf16.mxu0 0
    %1669 = vmatpush1.bf16.xpose.msra.mxu0 0
    %1670 = vmatprep.mubr.bf16.mxu0 0
    %1671 = vmatmul.mubr.bf16.gmra.mrb[0].mxu0 %v1633
    %v1672 = vpop.f32.mrb[0].mxu0
    %v1673 = vadd.f32 0.0, %v1672
    %v1674 = vpop.f32.mrb[0].mxu0
    %v1675 = vpop.f32.mrb[0].mxu0
    %v1676 = vpop.f32.mrb[0].mxu0
    %1677 = vdwg.mxu0
    %v1679 = vsel %vm429, %v1341, 0
    %v1682 = vsel %vm429, %v1393, 0
    %1684 = vmatprep.subr.bf16.mxu0 0
    %1685 = vmatpush1.bf16.xpose.msra.mxu0 %v1682
    %1686 = vmatprep.subr.bf16.mxu0 0
    %1687 = vmatpush1.bf16.xpose.msra.mxu0 0
    %1688 = vmatprep.subr.bf16.mxu0 0
    %1689 = vmatpush1.bf16.xpose.msra.mxu0 0
    %1690 = vmatprep.subr.bf16.mxu0 0
    %1691 = vmatpush1.bf16.xpose.msra.mxu0 0
    %1692 = vmatprep.subr.bf16.mxu0 0
    %1693 = vmatpush1.bf16.xpose.msra.mxu0 0
    %1694 = vmatprep.subr.bf16.mxu0 0
    %1695 = vmatpush1.bf16.xpose.msra.mxu0 0
    %1696 = vmatprep.subr.bf16.mxu0 0
    %1697 = vmatpush1.bf16.xpose.msra.mxu0 0
    %1698 = vmatprep.subr.bf16.mxu0 0
    %1699 = vmatpush1.bf16.xpose.msra.mxu0 0
    %1700 = vmatprep.subr.bf16.mxu0 0
    %1701 = vmatpush1.bf16.xpose.msra.mxu0 0
    %1702 = vmatprep.subr.bf16.mxu0 0
    %1703 = vmatpush1.bf16.xpose.msra.mxu0 0
    %1704 = vmatprep.subr.bf16.mxu0 0
    %1705 = vmatpush1.bf16.xpose.msra.mxu0 0
    %1706 = vmatprep.subr.bf16.mxu0 0
    %1707 = vmatpush1.bf16.xpose.msra.mxu0 0
    %1708 = vmatprep.subr.bf16.mxu0 0
    %1709 = vmatpush1.bf16.xpose.msra.mxu0 0
    %1710 = vmatprep.subr.bf16.mxu0 0
    %1711 = vmatpush1.bf16.xpose.msra.mxu0 0
    %1712 = vmatprep.subr.bf16.mxu0 0
    %1713 = vmatpush1.bf16.xpose.msra.mxu0 0
    %1714 = vmatprep.subr.bf16.mxu0 0
    %1715 = vmatpush1.bf16.xpose.msra.mxu0 0
    %1716 = vmatprep.mubr.bf16.mxu0 0
    %1717 = vmatmul.mubr.bf16.gmra.mrb[0].mxu0 %v1679
    %v1718 = vpop.f32.mrb[0].mxu0
    %v1719 = vadd.f32 0.0, %v1718
    %v1720 = vpop.f32.mrb[0].mxu0
    %v1721 = vpop.f32.mrb[0].mxu0
    %v1722 = vpop.f32.mrb[0].mxu0
    %1723 = vdwg.mxu0
    %v1725 = vsel %vm429, %v1342, 0
    %v1728 = vsel %vm429, %v1394, 0
    %1730 = vmatprep.subr.bf16.mxu0 0
    %1731 = vmatpush1.bf16.xpose.msra.mxu0 %v1728
    %1732 = vmatprep.subr.bf16.mxu0 0
    %1733 = vmatpush1.bf16.xpose.msra.mxu0 0
    %1734 = vmatprep.subr.bf16.mxu0 0
    %1735 = vmatpush1.bf16.xpose.msra.mxu0 0
    %1736 = vmatprep.subr.bf16.mxu0 0
    %1737 = vmatpush1.bf16.xpose.msra.mxu0 0
    %1738 = vmatprep.subr.bf16.mxu0 0
    %1739 = vmatpush1.bf16.xpose.msra.mxu0 0
    %1740 = vmatprep.subr.bf16.mxu0 0
    %1741 = vmatpush1.bf16.xpose.msra.mxu0 0
    %1742 = vmatprep.subr.bf16.mxu0 0
    %1743 = vmatpush1.bf16.xpose.msra.mxu0 0
    %1744 = vmatprep.subr.bf16.mxu0 0
    %1745 = vmatpush1.bf16.xpose.msra.mxu0 0
    %1746 = vmatprep.subr.bf16.mxu0 0
    %1747 = vmatpush1.bf16.xpose.msra.mxu0 0
    %1748 = vmatprep.subr.bf16.mxu0 0
    %1749 = vmatpush1.bf16.xpose.msra.mxu0 0
    %1750 = vmatprep.subr.bf16.mxu0 0
    %1751 = vmatpush1.bf16.xpose.msra.mxu0 0
    %1752 = vmatprep.subr.bf16.mxu0 0
    %1753 = vmatpush1.bf16.xpose.msra.mxu0 0
    %1754 = vmatprep.subr.bf16.mxu0 0
    %1755 = vmatpush1.bf16.xpose.msra.mxu0 0
    %1756 = vmatprep.subr.bf16.mxu0 0
    %1757 = vmatpush1.bf16.xpose.msra.mxu0 0
    %1758 = vmatprep.subr.bf16.mxu0 0
    %1759 = vmatpush1.bf16.xpose.msra.mxu0 0
    %1760 = vmatprep.subr.bf16.mxu0 0
    %1761 = vmatpush1.bf16.xpose.msra.mxu0 0
    %1762 = vmatprep.mubr.bf16.mxu0 0
    %1763 = vmatmul.mubr.bf16.gmra.mrb[0].mxu0 %v1725
    %v1764 = vpop.f32.mrb[0].mxu0
    %v1765 = vadd.f32 0.0, %v1764
    %v1766 = vpop.f32.mrb[0].mxu0
    %v1767 = vpop.f32.mrb[0].mxu0
    %v1768 = vpop.f32.mrb[0].mxu0
    %1769 = vdwg.mxu0
    %v1771 = vsel %vm429, %v1343, 0
    %v1774 = vsel %vm429, %v1395, 0
    %1776 = vmatprep.subr.bf16.mxu0 0
    %1777 = vmatpush1.bf16.xpose.msra.mxu0 %v1774
    %1778 = vmatprep.subr.bf16.mxu0 0
    %1779 = vmatpush1.bf16.xpose.msra.mxu0 0
    %1780 = vmatprep.subr.bf16.mxu0 0
    %1781 = vmatpush1.bf16.xpose.msra.mxu0 0
    %1782 = vmatprep.subr.bf16.mxu0 0
    %1783 = vmatpush1.bf16.xpose.msra.mxu0 0
    %1784 = vmatprep.subr.bf16.mxu0 0
    %1785 = vmatpush1.bf16.xpose.msra.mxu0 0
    %1786 = vmatprep.subr.bf16.mxu0 0
    %1787 = vmatpush1.bf16.xpose.msra.mxu0 0
    %1788 = vmatprep.subr.bf16.mxu0 0
    %1789 = vmatpush1.bf16.xpose.msra.mxu0 0
    %1790 = vmatprep.subr.bf16.mxu0 0
    %1791 = vmatpush1.bf16.xpose.msra.mxu0 0
    %1792 = vmatprep.subr.bf16.mxu0 0
    %1793 = vmatpush1.bf16.xpose.msra.mxu0 0
    %1794 = vmatprep.subr.bf16.mxu0 0
    %1795 = vmatpush1.bf16.xpose.msra.mxu0 0
    %1796 = vmatprep.subr.bf16.mxu0 0
    %1797 = vmatpush1.bf16.xpose.msra.mxu0 0
    %1798 = vmatprep.subr.bf16.mxu0 0
    %1799 = vmatpush1.bf16.xpose.msra.mxu0 0
    %1800 = vmatprep.subr.bf16.mxu0 0
    %1801 = vmatpush1.bf16.xpose.msra.mxu0 0
    %1802 = vmatprep.subr.bf16.mxu0 0
    %1803 = vmatpush1.bf16.xpose.msra.mxu0 0
    %1804 = vmatprep.subr.bf16.mxu0 0
    %1805 = vmatpush1.bf16.xpose.msra.mxu0 0
    %1806 = vmatprep.subr.bf16.mxu0 0
    %1807 = vmatpush1.bf16.xpose.msra.mxu0 0
    %1808 = vmatprep.mubr.bf16.mxu0 0
    %1809 = vmatmul.mubr.bf16.gmra.mrb[0].mxu0 %v1771
    %v1810 = vpop.f32.mrb[0].mxu0
    %v1811 = vadd.f32 0.0, %v1810
    %v1812 = vpop.f32.mrb[0].mxu0
    %v1813 = vpop.f32.mrb[0].mxu0
    %v1814 = vpop.f32.mrb[0].mxu0
    %1815 = vdwg.mxu0
    %v1816 = vsel %vm429, %v1489, -inf
    %1817 = vmax.xlane.f32.xlu0 %v1816
    %v1818 = vpop.xlane.xlu0 %1817
    %v1819 = vsel %vm429, %v1535, -inf
    %1820 = vmax.xlane.f32.xlu0 %v1819
    %v1821 = vpop.xlane.xlu0 %1820
    %v1822 = vsel %vm429, %v1581, -inf
    %1823 = vmax.xlane.f32.xlu0 %v1822
    %v1824 = vpop.xlane.xlu0 %1823
    %v1825 = vsel %vm429, %v1627, -inf
    %1826 = vmax.xlane.f32.xlu0 %v1825
    %v1827 = vpop.xlane.xlu0 %1826
    %v1828 = vsel %vm429, %v1673, -inf
    %1829 = vmax.xlane.f32.xlu0 %v1828
    %v1830 = vpop.xlane.xlu0 %1829
    %v1831 = vsel %vm429, %v1719, -inf
    %1832 = vmax.xlane.f32.xlu0 %v1831
    %v1833 = vpop.xlane.xlu0 %1832
    %v1834 = vsel %vm429, %v1765, -inf
    %1835 = vmax.xlane.f32.xlu0 %v1834
    %v1836 = vpop.xlane.xlu0 %1835
    %v1837 = vsel %vm429, %v1811, -inf
    %1838 = vmax.xlane.f32.xlu0 %v1837
    %v1839 = vpop.xlane.xlu0 %1838
    %v1840 = vsub.f32 %v1489, %v1818
    %v1841 = vsub.f32 %v1535, %v1821
    %v1842 = vsub.f32 %v1581, %v1824
    %v1843 = vsub.f32 %v1627, %v1827
    %v1844 = vsub.f32 %v1673, %v1830
    %v1845 = vsub.f32 %v1719, %v1833
    %v1846 = vsub.f32 %v1765, %v1836
    %v1847 = vsub.f32 %v1811, %v1839
    %v1848 = vmul.f32 %v1840, 1.442695
    %v1849 = vpow.pop %v1848
    %v1850 = vmul.f32 %v1841, 1.442695
    %v1851 = vpow.pop %v1850
    %v1852 = vmul.f32 %v1842, 1.442695
    %v1853 = vpow.pop %v1852
    %v1854 = vmul.f32 %v1843, 1.442695
    %v1855 = vpow.pop %v1854
    %v1856 = vmul.f32 %v1844, 1.442695
    %v1857 = vpow.pop %v1856
    %v1858 = vmul.f32 %v1845, 1.442695
    %v1859 = vpow.pop %v1858
    %v1860 = vmul.f32 %v1846, 1.442695
    %v1861 = vpow.pop %v1860
    %v1862 = vmul.f32 %v1847, 1.442695
    %v1863 = vpow.pop %v1862
    %v1864 = vsel %vm429, %v1849, 0.0
    %1865 = vadd.xlane.f32.xlu0 %v1864
    %v1866 = vpop.xlane.xlu0 %1865
    %v1867 = vsel %vm429, %v1851, 0.0
    %1868 = vadd.xlane.f32.xlu0 %v1867
    %v1869 = vpop.xlane.xlu0 %1868
    %v1870 = vsel %vm429, %v1853, 0.0
    %1871 = vadd.xlane.f32.xlu0 %v1870
    %v1872 = vpop.xlane.xlu0 %1871
    %v1873 = vsel %vm429, %v1855, 0.0
    %1874 = vadd.xlane.f32.xlu0 %v1873
    %v1875 = vpop.xlane.xlu0 %1874
    %v1876 = vsel %vm429, %v1857, 0.0
    %1877 = vadd.xlane.f32.xlu0 %v1876
    %v1878 = vpop.xlane.xlu0 %1877
    %v1879 = vsel %vm429, %v1859, 0.0
    %1880 = vadd.xlane.f32.xlu0 %v1879
    %v1881 = vpop.xlane.xlu0 %1880
    %v1882 = vsel %vm429, %v1861, 0.0
    %1883 = vadd.xlane.f32.xlu0 %v1882
    %v1884 = vpop.xlane.xlu0 %1883
    %v1885 = vsel %vm429, %v1863, 0.0
    %1886 = vadd.xlane.f32.xlu0 %v1885
    %v1887 = vpop.xlane.xlu0 %1886
    %v1888 = vrcp.pop %v1866
    %v1889 = vrcp.pop %v1869
    %v1890 = vrcp.pop %v1872
    %v1891 = vrcp.pop %v1875
    %v1892 = vrcp.pop %v1878
    %v1893 = vrcp.pop %v1881
    %v1894 = vrcp.pop %v1884
    %v1895 = vrcp.pop %v1887
    %v1896 = vmul.f32 %v1849, %v1888
    %v1897 = vmul.f32 %v1851, %v1889
    %v1898 = vmul.f32 %v1853, %v1890
    %v1899 = vmul.f32 %v1855, %v1891
    %v1900 = vmul.f32 %v1857, %v1892
    %v1901 = vmul.f32 %v1859, %v1893
    %v1902 = vmul.f32 %v1861, %v1894
    %v1903 = vmul.f32 %v1863, %v1895
    %v1904 = vpack.c.bf16 %v1896, %v1896
    %v1905 = vpack.c.bf16 %v1897, %v1897
    %v1906 = vpack.c.bf16 %v1898, %v1898
    %v1907 = vpack.c.bf16 %v1899, %v1899
    %v1908 = vpack.c.bf16 %v1900, %v1900
    %v1909 = vpack.c.bf16 %v1901, %v1901
    %v1910 = vpack.c.bf16 %v1902, %v1902
    %v1911 = vpack.c.bf16 %v1903, %v1903
    %v1913 = vsel %vm429, %v1904, 0
    %1915 = vmatprep.subr.bf16.mxu0 0
    %1916 = vmatpush1.bf16.msra.mxu0 %v1440
    %1917 = vmatprep.subr.bf16.mxu0 0
    %1918 = vmatpush1.bf16.msra.mxu0 0
    %1919 = vmatprep.subr.bf16.mxu0 0
    %1920 = vmatpush1.bf16.msra.mxu0 0
    %1921 = vmatprep.subr.bf16.mxu0 0
    %1922 = vmatpush1.bf16.msra.mxu0 0
    %1923 = vmatprep.subr.bf16.mxu0 0
    %1924 = vmatpush1.bf16.msra.mxu0 0
    %1925 = vmatprep.subr.bf16.mxu0 0
    %1926 = vmatpush1.bf16.msra.mxu0 0
    %1927 = vmatprep.subr.bf16.mxu0 0
    %1928 = vmatpush1.bf16.msra.mxu0 0
    %1929 = vmatprep.subr.bf16.mxu0 0
    %1930 = vmatpush1.bf16.msra.mxu0 0
    %1931 = vmatprep.subr.bf16.mxu0 0
    %1932 = vmatpush1.bf16.msra.mxu0 0
    %1933 = vmatprep.subr.bf16.mxu0 0
    %1934 = vmatpush1.bf16.msra.mxu0 0
    %1935 = vmatprep.subr.bf16.mxu0 0
    %1936 = vmatpush1.bf16.msra.mxu0 0
    %1937 = vmatprep.subr.bf16.mxu0 0
    %1938 = vmatpush1.bf16.msra.mxu0 0
    %1939 = vmatprep.subr.bf16.mxu0 0
    %1940 = vmatpush1.bf16.msra.mxu0 0
    %1941 = vmatprep.subr.bf16.mxu0 0
    %1942 = vmatpush1.bf16.msra.mxu0 0
    %1943 = vmatprep.subr.bf16.mxu0 0
    %1944 = vmatpush1.bf16.msra.mxu0 0
    %1945 = vmatprep.subr.bf16.mxu0 0
    %1946 = vmatpush1.bf16.msra.mxu0 0
    %1947 = vmatprep.mubr.bf16.mxu0 0
    %1948 = vmatmul.mubr.bf16.gmra.mrb[0].mxu0 %v1913
    %v1949 = vpop.f32.mrb[0].mxu0
    %v1950 = vadd.f32 0.0, %v1949
    %v1951 = vpop.f32.mrb[0].mxu0
    %v1952 = vpop.f32.mrb[0].mxu0
    %v1953 = vpop.f32.mrb[0].mxu0
    %1954 = vdwg.mxu0
    %v1956 = vsel %vm429, %v1905, 0
    %1958 = vmatprep.subr.bf16.mxu0 0
    %1959 = vmatpush1.bf16.msra.mxu0 %v1441
    %1960 = vmatprep.subr.bf16.mxu0 0
    %1961 = vmatpush1.bf16.msra.mxu0 0
    %1962 = vmatprep.subr.bf16.mxu0 0
    %1963 = vmatpush1.bf16.msra.mxu0 0
    %1964 = vmatprep.subr.bf16.mxu0 0
    %1965 = vmatpush1.bf16.msra.mxu0 0
    %1966 = vmatprep.subr.bf16.mxu0 0
    %1967 = vmatpush1.bf16.msra.mxu0 0
    %1968 = vmatprep.subr.bf16.mxu0 0
    %1969 = vmatpush1.bf16.msra.mxu0 0
    %1970 = vmatprep.subr.bf16.mxu0 0
    %1971 = vmatpush1.bf16.msra.mxu0 0
    %1972 = vmatprep.subr.bf16.mxu0 0
    %1973 = vmatpush1.bf16.msra.mxu0 0
    %1974 = vmatprep.subr.bf16.mxu0 0
    %1975 = vmatpush1.bf16.msra.mxu0 0
    %1976 = vmatprep.subr.bf16.mxu0 0
    %1977 = vmatpush1.bf16.msra.mxu0 0
    %1978 = vmatprep.subr.bf16.mxu0 0
    %1979 = vmatpush1.bf16.msra.mxu0 0
    %1980 = vmatprep.subr.bf16.mxu0 0
    %1981 = vmatpush1.bf16.msra.mxu0 0
    %1982 = vmatprep.subr.bf16.mxu0 0
    %1983 = vmatpush1.bf16.msra.mxu0 0
    %1984 = vmatprep.subr.bf16.mxu0 0
    %1985 = vmatpush1.bf16.msra.mxu0 0
    %1986 = vmatprep.subr.bf16.mxu0 0
    %1987 = vmatpush1.bf16.msra.mxu0 0
    %1988 = vmatprep.subr.bf16.mxu0 0
    %1989 = vmatpush1.bf16.msra.mxu0 0
    %1990 = vmatprep.mubr.bf16.mxu0 0
    %1991 = vmatmul.mubr.bf16.gmra.mrb[0].mxu0 %v1956
    %v1992 = vpop.f32.mrb[0].mxu0
    %v1993 = vadd.f32 0.0, %v1992
    %v1994 = vpop.f32.mrb[0].mxu0
    %v1995 = vpop.f32.mrb[0].mxu0
    %v1996 = vpop.f32.mrb[0].mxu0
    %1997 = vdwg.mxu0
    %v1999 = vsel %vm429, %v1906, 0
    %2001 = vmatprep.subr.bf16.mxu0 0
    %2002 = vmatpush1.bf16.msra.mxu0 %v1442
    %2003 = vmatprep.subr.bf16.mxu0 0
    %2004 = vmatpush1.bf16.msra.mxu0 0
    %2005 = vmatprep.subr.bf16.mxu0 0
    %2006 = vmatpush1.bf16.msra.mxu0 0
    %2007 = vmatprep.subr.bf16.mxu0 0
    %2008 = vmatpush1.bf16.msra.mxu0 0
    %2009 = vmatprep.subr.bf16.mxu0 0
    %2010 = vmatpush1.bf16.msra.mxu0 0
    %2011 = vmatprep.subr.bf16.mxu0 0
    %2012 = vmatpush1.bf16.msra.mxu0 0
    %2013 = vmatprep.subr.bf16.mxu0 0
    %2014 = vmatpush1.bf16.msra.mxu0 0
    %2015 = vmatprep.subr.bf16.mxu0 0
    %2016 = vmatpush1.bf16.msra.mxu0 0
    %2017 = vmatprep.subr.bf16.mxu0 0
    %2018 = vmatpush1.bf16.msra.mxu0 0
    %2019 = vmatprep.subr.bf16.mxu0 0
    %2020 = vmatpush1.bf16.msra.mxu0 0
    %2021 = vmatprep.subr.bf16.mxu0 0
    %2022 = vmatpush1.bf16.msra.mxu0 0
    %2023 = vmatprep.subr.bf16.mxu0 0
    %2024 = vmatpush1.bf16.msra.mxu0 0
    %2025 = vmatprep.subr.bf16.mxu0 0
    %2026 = vmatpush1.bf16.msra.mxu0 0
    %2027 = vmatprep.subr.bf16.mxu0 0
    %2028 = vmatpush1.bf16.msra.mxu0 0
    %2029 = vmatprep.subr.bf16.mxu0 0
    %2030 = vmatpush1.bf16.msra.mxu0 0
    %2031 = vmatprep.subr.bf16.mxu0 0
    %2032 = vmatpush1.bf16.msra.mxu0 0
    %2033 = vmatprep.mubr.bf16.mxu0 0
    %2034 = vmatmul.mubr.bf16.gmra.mrb[0].mxu0 %v1999
    %v2035 = vpop.f32.mrb[0].mxu0
    %v2036 = vadd.f32 0.0, %v2035
    %v2037 = vpop.f32.mrb[0].mxu0
    %v2038 = vpop.f32.mrb[0].mxu0
    %v2039 = vpop.f32.mrb[0].mxu0
    %2040 = vdwg.mxu0
    %v2042 = vsel %vm429, %v1907, 0
    %2044 = vmatprep.subr.bf16.mxu0 0
    %2045 = vmatpush1.bf16.msra.mxu0 %v1443
    %2046 = vmatprep.subr.bf16.mxu0 0
    %2047 = vmatpush1.bf16.msra.mxu0 0
    %2048 = vmatprep.subr.bf16.mxu0 0
    %2049 = vmatpush1.bf16.msra.mxu0 0
    %2050 = vmatprep.subr.bf16.mxu0 0
    %2051 = vmatpush1.bf16.msra.mxu0 0
    %2052 = vmatprep.subr.bf16.mxu0 0
    %2053 = vmatpush1.bf16.msra.mxu0 0
    %2054 = vmatprep.subr.bf16.mxu0 0
    %2055 = vmatpush1.bf16.msra.mxu0 0
    %2056 = vmatprep.subr.bf16.mxu0 0
    %2057 = vmatpush1.bf16.msra.mxu0 0
    %2058 = vmatprep.subr.bf16.mxu0 0
    %2059 = vmatpush1.bf16.msra.mxu0 0
    %2060 = vmatprep.subr.bf16.mxu0 0
    %2061 = vmatpush1.bf16.msra.mxu0 0
    %2062 = vmatprep.subr.bf16.mxu0 0
    %2063 = vmatpush1.bf16.msra.mxu0 0
    %2064 = vmatprep.subr.bf16.mxu0 0
    %2065 = vmatpush1.bf16.msra.mxu0 0
    %2066 = vmatprep.subr.bf16.mxu0 0
    %2067 = vmatpush1.bf16.msra.mxu0 0
    %2068 = vmatprep.subr.bf16.mxu0 0
    %2069 = vmatpush1.bf16.msra.mxu0 0
    %2070 = vmatprep.subr.bf16.mxu0 0
    %2071 = vmatpush1.bf16.msra.mxu0 0
    %2072 = vmatprep.subr.bf16.mxu0 0
    %2073 = vmatpush1.bf16.msra.mxu0 0
    %2074 = vmatprep.subr.bf16.mxu0 0
    %2075 = vmatpush1.bf16.msra.mxu0 0
    %2076 = vmatprep.mubr.bf16.mxu0 0
    %2077 = vmatmul.mubr.bf16.gmra.mrb[0].mxu0 %v2042
    %v2078 = vpop.f32.mrb[0].mxu0
    %v2079 = vadd.f32 0.0, %v2078
    %v2080 = vpop.f32.mrb[0].mxu0
    %v2081 = vpop.f32.mrb[0].mxu0
    %v2082 = vpop.f32.mrb[0].mxu0
    %2083 = vdwg.mxu0
    %v2085 = vsel %vm429, %v1908, 0
    %2087 = vmatprep.subr.bf16.mxu0 0
    %2088 = vmatpush1.bf16.msra.mxu0 %v1444
    %2089 = vmatprep.subr.bf16.mxu0 0
    %2090 = vmatpush1.bf16.msra.mxu0 0
    %2091 = vmatprep.subr.bf16.mxu0 0
    %2092 = vmatpush1.bf16.msra.mxu0 0
    %2093 = vmatprep.subr.bf16.mxu0 0
    %2094 = vmatpush1.bf16.msra.mxu0 0
    %2095 = vmatprep.subr.bf16.mxu0 0
    %2096 = vmatpush1.bf16.msra.mxu0 0
    %2097 = vmatprep.subr.bf16.mxu0 0
    %2098 = vmatpush1.bf16.msra.mxu0 0
    %2099 = vmatprep.subr.bf16.mxu0 0
    %2100 = vmatpush1.bf16.msra.mxu0 0
    %2101 = vmatprep.subr.bf16.mxu0 0
    %2102 = vmatpush1.bf16.msra.mxu0 0
    %2103 = vmatprep.subr.bf16.mxu0 0
    %2104 = vmatpush1.bf16.msra.mxu0 0
    %2105 = vmatprep.subr.bf16.mxu0 0
    %2106 = vmatpush1.bf16.msra.mxu0 0
    %2107 = vmatprep.subr.bf16.mxu0 0
    %2108 = vmatpush1.bf16.msra.mxu0 0
    %2109 = vmatprep.subr.bf16.mxu0 0
    %2110 = vmatpush1.bf16.msra.mxu0 0
    %2111 = vmatprep.subr.bf16.mxu0 0
    %2112 = vmatpush1.bf16.msra.mxu0 0
    %2113 = vmatprep.subr.bf16.mxu0 0
    %2114 = vmatpush1.bf16.msra.mxu0 0
    %2115 = vmatprep.subr.bf16.mxu0 0
    %2116 = vmatpush1.bf16.msra.mxu0 0
    %2117 = vmatprep.subr.bf16.mxu0 0
    %2118 = vmatpush1.bf16.msra.mxu0 0
    %2119 = vmatprep.mubr.bf16.mxu0 0
    %2120 = vmatmul.mubr.bf16.gmra.mrb[0].mxu0 %v2085
    %v2121 = vpop.f32.mrb[0].mxu0
    %v2122 = vadd.f32 0.0, %v2121
    %v2123 = vpop.f32.mrb[0].mxu0
    %v2124 = vpop.f32.mrb[0].mxu0
    %v2125 = vpop.f32.mrb[0].mxu0
    %2126 = vdwg.mxu0
    %v2128 = vsel %vm429, %v1909, 0
    %2130 = vmatprep.subr.bf16.mxu0 0
    %2131 = vmatpush1.bf16.msra.mxu0 %v1445
    %2132 = vmatprep.subr.bf16.mxu0 0
    %2133 = vmatpush1.bf16.msra.mxu0 0
    %2134 = vmatprep.subr.bf16.mxu0 0
    %2135 = vmatpush1.bf16.msra.mxu0 0
    %2136 = vmatprep.subr.bf16.mxu0 0
    %2137 = vmatpush1.bf16.msra.mxu0 0
    %2138 = vmatprep.subr.bf16.mxu0 0
    %2139 = vmatpush1.bf16.msra.mxu0 0
    %2140 = vmatprep.subr.bf16.mxu0 0
    %2141 = vmatpush1.bf16.msra.mxu0 0
    %2142 = vmatprep.subr.bf16.mxu0 0
    %2143 = vmatpush1.bf16.msra.mxu0 0
    %2144 = vmatprep.subr.bf16.mxu0 0
    %2145 = vmatpush1.bf16.msra.mxu0 0
    %2146 = vmatprep.subr.bf16.mxu0 0
    %2147 = vmatpush1.bf16.msra.mxu0 0
    %2148 = vmatprep.subr.bf16.mxu0 0
    %2149 = vmatpush1.bf16.msra.mxu0 0
    %2150 = vmatprep.subr.bf16.mxu0 0
    %2151 = vmatpush1.bf16.msra.mxu0 0
    %2152 = vmatprep.subr.bf16.mxu0 0
    %2153 = vmatpush1.bf16.msra.mxu0 0
    %2154 = vmatprep.subr.bf16.mxu0 0
    %2155 = vmatpush1.bf16.msra.mxu0 0
    %2156 = vmatprep.subr.bf16.mxu0 0
    %2157 = vmatpush1.bf16.msra.mxu0 0
    %2158 = vmatprep.subr.bf16.mxu0 0
    %2159 = vmatpush1.bf16.msra.mxu0 0
    %2160 = vmatprep.subr.bf16.mxu0 0
    %2161 = vmatpush1.bf16.msra.mxu0 0
    %2162 = vmatprep.mubr.bf16.mxu0 0
    %2163 = vmatmul.mubr.bf16.gmra.mrb[0].mxu0 %v2128
    %v2164 = vpop.f32.mrb[0].mxu0
    %v2165 = vadd.f32 0.0, %v2164
    %v2166 = vpop.f32.mrb[0].mxu0
    %v2167 = vpop.f32.mrb[0].mxu0
    %v2168 = vpop.f32.mrb[0].mxu0
    %2169 = vdwg.mxu0
    %v2171 = vsel %vm429, %v1910, 0
    %2173 = vmatprep.subr.bf16.mxu0 0
    %2174 = vmatpush1.bf16.msra.mxu0 %v1446
    %2175 = vmatprep.subr.bf16.mxu0 0
    %2176 = vmatpush1.bf16.msra.mxu0 0
    %2177 = vmatprep.subr.bf16.mxu0 0
    %2178 = vmatpush1.bf16.msra.mxu0 0
    %2179 = vmatprep.subr.bf16.mxu0 0
    %2180 = vmatpush1.bf16.msra.mxu0 0
    %2181 = vmatprep.subr.bf16.mxu0 0
    %2182 = vmatpush1.bf16.msra.mxu0 0
    %2183 = vmatprep.subr.bf16.mxu0 0
    %2184 = vmatpush1.bf16.msra.mxu0 0
    %2185 = vmatprep.subr.bf16.mxu0 0
    %2186 = vmatpush1.bf16.msra.mxu0 0
    %2187 = vmatprep.subr.bf16.mxu0 0
    %2188 = vmatpush1.bf16.msra.mxu0 0
    %2189 = vmatprep.subr.bf16.mxu0 0
    %2190 = vmatpush1.bf16.msra.mxu0 0
    %2191 = vmatprep.subr.bf16.mxu0 0
    %2192 = vmatpush1.bf16.msra.mxu0 0
    %2193 = vmatprep.subr.bf16.mxu0 0
    %2194 = vmatpush1.bf16.msra.mxu0 0
    %2195 = vmatprep.subr.bf16.mxu0 0
    %2196 = vmatpush1.bf16.msra.mxu0 0
    %2197 = vmatprep.subr.bf16.mxu0 0
    %2198 = vmatpush1.bf16.msra.mxu0 0
    %2199 = vmatprep.subr.bf16.mxu0 0
    %2200 = vmatpush1.bf16.msra.mxu0 0
    %2201 = vmatprep.subr.bf16.mxu0 0
    %2202 = vmatpush1.bf16.msra.mxu0 0
    %2203 = vmatprep.subr.bf16.mxu0 0
    %2204 = vmatpush1.bf16.msra.mxu0 0
    %2205 = vmatprep.mubr.bf16.mxu0 0
    %2206 = vmatmul.mubr.bf16.gmra.mrb[0].mxu0 %v2171
    %v2207 = vpop.f32.mrb[0].mxu0
    %v2208 = vadd.f32 0.0, %v2207
    %v2209 = vpop.f32.mrb[0].mxu0
    %v2210 = vpop.f32.mrb[0].mxu0
    %v2211 = vpop.f32.mrb[0].mxu0
    %2212 = vdwg.mxu0
    %v2214 = vsel %vm429, %v1911, 0
    %2216 = vmatprep.subr.bf16.mxu0 0
    %2217 = vmatpush1.bf16.msra.mxu0 %v1447
    %2218 = vmatprep.subr.bf16.mxu0 0
    %2219 = vmatpush1.bf16.msra.mxu0 0
    %2220 = vmatprep.subr.bf16.mxu0 0
    %2221 = vmatpush1.bf16.msra.mxu0 0
    %2222 = vmatprep.subr.bf16.mxu0 0
    %2223 = vmatpush1.bf16.msra.mxu0 0
    %2224 = vmatprep.subr.bf16.mxu0 0
    %2225 = vmatpush1.bf16.msra.mxu0 0
    %2226 = vmatprep.subr.bf16.mxu0 0
    %2227 = vmatpush1.bf16.msra.mxu0 0
    %2228 = vmatprep.subr.bf16.mxu0 0
    %2229 = vmatpush1.bf16.msra.mxu0 0
    %2230 = vmatprep.subr.bf16.mxu0 0
    %2231 = vmatpush1.bf16.msra.mxu0 0
    %2232 = vmatprep.subr.bf16.mxu0 0
    %2233 = vmatpush1.bf16.msra.mxu0 0
    %2234 = vmatprep.subr.bf16.mxu0 0
    %2235 = vmatpush1.bf16.msra.mxu0 0
    %2236 = vmatprep.subr.bf16.mxu0 0
    %2237 = vmatpush1.bf16.msra.mxu0 0
    %2238 = vmatprep.subr.bf16.mxu0 0
    %2239 = vmatpush1.bf16.msra.mxu0 0
    %2240 = vmatprep.subr.bf16.mxu0 0
    %2241 = vmatpush1.bf16.msra.mxu0 0
    %2242 = vmatprep.subr.bf16.mxu0 0
    %2243 = vmatpush1.bf16.msra.mxu0 0
    %2244 = vmatprep.subr.bf16.mxu0 0
    %2245 = vmatpush1.bf16.msra.mxu0 0
    %2246 = vmatprep.subr.bf16.mxu0 0
    %2247 = vmatpush1.bf16.msra.mxu0 0
    %2248 = vmatprep.mubr.bf16.mxu0 0
    %2249 = vmatmul.mubr.bf16.gmra.mrb[0].mxu0 %v2214
    %v2250 = vpop.f32.mrb[0].mxu0
    %v2251 = vadd.f32 0.0, %v2250
    %v2252 = vpop.f32.mrb[0].mxu0
    %v2253 = vpop.f32.mrb[0].mxu0
    %v2254 = vpop.f32.mrb[0].mxu0
    %2255 = vdwg.mxu0
    %2257 = vrot.lane.b32.xlu0 %v1993, 16
    %v2258 = vpop.permute.xlu0 %2257
    %2261 = vrot.lane.b32.xlu0 %v2036, 32
    %v2262 = vpop.permute.xlu0 %2261
    %2265 = vrot.lane.b32.xlu0 %v2079, 48
    %v2266 = vpop.permute.xlu0 %2265
    %2269 = vrot.lane.b32.xlu0 %v2122, 64
    %v2270 = vpop.permute.xlu0 %2269
    %2273 = vrot.lane.b32.xlu0 %v2165, 80
    %v2274 = vpop.permute.xlu0 %2273
    %2277 = vrot.lane.b32.xlu0 %v2208, 96
    %v2278 = vpop.permute.xlu0 %2277
    %2281 = vrot.lane.b32.xlu0 %v2251, 112
    %v2282 = vpop.permute.xlu0 %2281
    %v2284 = vsel %vm429, %v1950, %v2258
    %v2285 = vsel %vm1267, %v2284, %v2262
    %v2286 = vsel %vm1269, %v2285, %v2266
    %v2287 = vsel %vm1271, %v2286, %v2270
    %v2288 = vsel %vm1273, %v2287, %v2274
    %v2289 = vsel %vm1275, %v2288, %v2278
    %v2290 = vsel %vm1277, %v2289, %v2282
    %2292 = vrot.lane.b32.xlu0 %v1897, 16
    %v2293 = vpop.permute.xlu0 %2292
    %2296 = vrot.lane.b32.xlu0 %v1898, 32
    %v2297 = vpop.permute.xlu0 %2296
    %2300 = vrot.lane.b32.xlu0 %v1899, 48
    %v2301 = vpop.permute.xlu0 %2300
    %2304 = vrot.lane.b32.xlu0 %v1900, 64
    %v2305 = vpop.permute.xlu0 %2304
    %2308 = vrot.lane.b32.xlu0 %v1901, 80
    %v2309 = vpop.permute.xlu0 %2308
    %2312 = vrot.lane.b32.xlu0 %v1902, 96
    %v2313 = vpop.permute.xlu0 %2312
    %2316 = vrot.lane.b32.xlu0 %v1903, 112
    %v2317 = vpop.permute.xlu0 %2316
    %v2319 = vsel %vm429, %v1896, %v2293
    %v2320 = vsel %vm1267, %v2319, %v2297
    %v2321 = vsel %vm1269, %v2320, %v2301
    %v2322 = vsel %vm1271, %v2321, %v2305
    %v2323 = vsel %vm1273, %v2322, %v2309
    %v2324 = vsel %vm1275, %v2323, %v2313
    %v2325 = vsel %vm1277, %v2324, %v2317
    %v2326 = vpack.c.bf16 %v2290, %v1278
    %v2327 = vld [vmem:[#allocation10] sm:$0xff]
    %v2328 = vld [vmem:[#allocation10 + $0x8] sm:$0xff]
    %v2329 = vld [vmem:[#allocation10 + $0x10] sm:$0xff]
    %v2330 = vld [vmem:[#allocation10 + $0x18] sm:$0xff]
    %v2331 = vld [vmem:[#allocation10 + $0x20] sm:$0xff]
    %v2332 = vld [vmem:[#allocation10 + $0x28] sm:$0xff]
    %v2333 = vld [vmem:[#allocation10 + $0x30] sm:$0xff]
    %v2334 = vld [vmem:[#allocation10 + $0x38] sm:$0xff]
    %v2335 = vld [vmem:[#allocation10 + $0x40] sm:$0xff]
    %v2336 = vld [vmem:[#allocation10 + $0x48] sm:$0xff]
    %v2337 = vld [vmem:[#allocation10 + $0x50] sm:$0xff]
    %v2338 = vld [vmem:[#allocation10 + $0x58] sm:$0xff]
    %v2339 = vld [vmem:[#allocation10 + $0x60] sm:$0xff]
    %v2340 = vld [vmem:[#allocation10 + $0x68] sm:$0xff]
    %v2341 = vld [vmem:[#allocation10 + $0x70] sm:$0xff]
    %v2342 = vld [vmem:[#allocation10 + $0x78] sm:$0xff]
    %v2343 = vpack.c.bf16 %v2328, %v2327
    %v2344 = vpack.c.bf16 %v2330, %v2329
    %v2345 = vpack.c.bf16 %v2332, %v2331
    %v2346 = vpack.c.bf16 %v2334, %v2333
    %v2347 = vpack.c.bf16 %v2336, %v2335
    %v2348 = vpack.c.bf16 %v2338, %v2337
    %v2349 = vpack.c.bf16 %v2340, %v2339
    %v2350 = vpack.c.bf16 %v2342, %v2341
    %v2351 = vld [vmem:[%s7] sm:$0x1]
    %v2353 = vlaneseq
    %v2354 = vshrl.u32 %v2353, 7
    %v2355 = vsub.s32 0, %v2354
    %v2356 = vrot.slane %v2351, %v2355
    %2358 = vmatprep.subr.bf16.mxu0 0
    %2359 = vmatpush1.bf16.msra.mxu0 %v2343
    %2360 = vmatprep.subr.bf16.mxu0 0
    %2361 = vmatpush1.bf16.msra.mxu0 %v2344
    %2362 = vmatprep.subr.bf16.mxu0 0
    %2363 = vmatpush1.bf16.msra.mxu0 %v2345
    %2364 = vmatprep.subr.bf16.mxu0 0
    %2365 = vmatpush1.bf16.msra.mxu0 %v2346
    %2366 = vmatprep.subr.bf16.mxu0 0
    %2367 = vmatpush1.bf16.msra.mxu0 %v2347
    %2368 = vmatprep.subr.bf16.mxu0 0
    %2369 = vmatpush1.bf16.msra.mxu0 %v2348
    %2370 = vmatprep.subr.bf16.mxu0 0
    %2371 = vmatpush1.bf16.msra.mxu0 %v2349
    %2372 = vmatprep.subr.bf16.mxu0 0
    %2373 = vmatpush1.bf16.msra.mxu0 %v2350
    %2374 = vmatprep.subr.bf16.mxu0 0
    %2375 = vmatpush1.bf16.msra.mxu0 0
    %2376 = vmatprep.subr.bf16.mxu0 0
    %2377 = vmatpush1.bf16.msra.mxu0 0
    %2378 = vmatprep.subr.bf16.mxu0 0
    %2379 = vmatpush1.bf16.msra.mxu0 0
    %2380 = vmatprep.subr.bf16.mxu0 0
    %2381 = vmatpush1.bf16.msra.mxu0 0
    %2382 = vmatprep.subr.bf16.mxu0 0
    %2383 = vmatpush1.bf16.msra.mxu0 0
    %2384 = vmatprep.subr.bf16.mxu0 0
    %2385 = vmatpush1.bf16.msra.mxu0 0
    %2386 = vmatprep.subr.bf16.mxu0 0
    %2387 = vmatpush1.bf16.msra.mxu0 0
    %2388 = vmatprep.subr.bf16.mxu0 0
    %2389 = vmatpush1.bf16.msra.mxu0 0
    %2390 = vmatprep.mubr.bf16.mxu0 0
    %2391 = vmatmul.mubr.bf16.gmra.mrb[0].mxu0 %v2326
    %v2392 = vpop.f32.mrb[0].mxu0
    %v2393 = vadd.f32 %v2356, %v2392
    %v2394 = vpop.f32.mrb[0].mxu0
    %v2395 = vpop.f32.mrb[0].mxu0
    %v2396 = vadd.f32 %v2356, %v2395
    %v2397 = vpop.f32.mrb[0].mxu0
    %2398 = vdwg.mxu0
    %2399 = vst [vmem:[#allocation11] sm:$0xff] %v2393
    %2400 = vst [vmem:[#allocation11 + $0x8] sm:$0xff] %v2396
    %2401 = vst [vmem:[%s9] sm:$0xff] %v1313
    %2402 = vst [vmem:[%s9 + $0x8] sm:$0xff] %v2325
    // Predicated region
    $region54: #{multi_attention_network.1} parent=1 // pred_check
      _
    $region55: #{multi_attention_network.1} parent=1 // pred_check_branch
      %2404 = sbr.rel (0) target = $region57
    $region56: #{multi_attention_network.1} parent=1 // pred_region
      %s2406 = ssub.s32 256, 256
      %2407 = vsyncadd [#allocation4], %s2406
      %s2408 = sshll.u32 [#allocation11], 4
      %s2409 = int_to_ptr.vmem [resolvable:$true] %s2408
      %2414 = dma.vmem_to_hbm [thread:$0]  %s2409, 256, %s8, [#allocation4], 128, 128, 8
    $region57: #{multi_attention_network.1} parent=1 // pred_fallthru
      _
    // Predicated region
    $region58: #{multi_attention_network.1} parent=1 // pred_check
      _
    $region59: #{multi_attention_network.1} parent=1 // pred_check_branch
      %2416 = sbr.rel (0) target = $region61
    $region60: #{multi_attention_network.1} parent=1 // pred_region
      _
    $region61: #{multi_attention_network.1} parent=1 // pred_fallthru
      _
    // Predicated region
    $region62: #{multi_attention_network.1} parent=1 // pred_check
      _
    $region63: #{multi_attention_network.1} parent=1 // pred_check_branch
      %2418 = sbr.rel (0) target = $region65
    $region64: #{multi_attention_network.1} parent=1 // pred_region
      %2419 = dma.done [#allocation4], 256
    $region65: #{multi_attention_network.1} parent=1 // pred_fallthru
      _
    // Predicated region
    $region66: #{multi_attention_network.1} parent=1 // pred_check
      _
    $region67: #{multi_attention_network.1} parent=1 // pred_check_branch
      %2421 = sbr.rel (0) target = $region69
    $region68: #{multi_attention_network.1} parent=1 // pred_region
      _
    $region69: #{multi_attention_network.1} parent=1 // pred_fallthru
      _
    %2422 = vsyncpa [#allocation3], 1
    %2423 = vsyncpa [#allocation6], 1
    %2424 = vsyncpa [#allocation9], 1
    %2425 = vsyncpa [#allocation4], 1

</llo_original>
